<compile_context>
chip_gen: v6e
topology: v6e:2x2x1
jax: 0.10.0
libtpu: 0.0.40
codegen_flags: <defaults>
</compile_context>

<pallas_src>
import math
from functools import partial

import jax
import jax.numpy as jnp
from jax.experimental import pallas as pl
from jax.experimental.pallas import tpu as pltpu


CONFIG = dict(d_model=32, d_k=8, d_v=8, n_heads=4, d_ff=64, dropout=0.0)
BATCH = 2
SEQ = 8


def _supports_approx_reciprocal():
    """Approximate EUP reciprocal is only available on TPU v6 (Trillium)+."""
    try:
        kind = jax.devices()[0].device_kind.lower()
    except Exception:
        return False
    return any(tag in kind for tag in ("v6", "v7", "trillium"))


def _layer_norm(x, gamma, beta, eps=1e-6):
    # PyTorch LayerNorm (biased variance); rsqrt keeps the divide on the EUP.
    mean = jnp.mean(x, axis=-1, keepdims=True)
    var = jnp.mean((x - mean) ** 2, axis=-1, keepdims=True)
    return (x - mean) * jax.lax.rsqrt(var + eps) * gamma + beta


# ----------------------------------------------------------------------------
# Pallas kernel: full EncoderLayer forward, all batches in one invocation
# ----------------------------------------------------------------------------
def encoder_layer_kernel(
    x_ref, mask_ref, wqkv_ref, wo_ref, w1_ref, w2_ref, small_ref,
    out_ref, attn_ref,
    *, n_heads, d_k, d_v, d_model, d_ff, batch, seq, use_approx_recip,
):
    f32 = jnp.float32
    x = x_ref[...]                       # (B*S, d_model)
    mask_add = mask_ref[...]             # (B*S, B*S) additive bias: 0 keep / -1e9 masked

    small = small_ref[...]               # packed biases + LayerNorm params (10, 96)
    hk = n_heads * d_k
    hv = n_heads * d_v
    qkv_w = 2 * hk + hv
    b_qkv = small[0:1, :qkv_w]
    b_1 = small[1:2, :d_ff]
    b_o = small[2:3, :d_model]
    b_2 = small[3:4, :d_model]
    g_mha, be_mha = small[4:5, :d_model], small[5:6, :d_model]
    g_enc, be_enc = small[6:7, :d_model], small[7:8, :d_model]
    g_ffn, be_ffn = small[8:9, :d_model], small[9:10, :d_model]

    # fused Q|K|V projection; 1/sqrt(d_k) is pre-folded into the Q columns/bias
    qkv = jnp.dot(x, wqkv_ref[...], preferred_element_type=f32) + b_qkv

    nt_dims = (((1,), (1,)), ((), ()))   # contract last dims: q @ k^T, no explicit transpose

    ctx_parts = []
    for h in range(n_heads):             # short unrolled loop; each step is whole-batch
        qh = qkv[:, h * d_k:(h + 1) * d_k]
        kh = qkv[:, hk + h * d_k: hk + (h + 1) * d_k]
        vh = qkv[:, 2 * hk + h * d_v: 2 * hk + (h + 1) * d_v]

        # additive mask: masked / cross-batch scores drop to ~-1e9 and exp -> exactly 0
        s = jax.lax.dot_general(qh, kh, nt_dims, preferred_element_type=f32) + mask_add
        s = s - jnp.max(s, axis=-1, keepdims=True)
        e = jnp.exp(s)
        inv_den = pl.reciprocal(jnp.sum(e, axis=-1, keepdims=True),
                                approx=use_approx_recip)
        # NOTE: a fully-masked row would degenerate to a softmax over all B*S keys
        # (reference: uniform over S). Not reachable with this mask.
        a = e * inv_den                  # (B*S, B*S); cross-batch weights are exactly 0

        # store attention directly in (B, H, S, S) layout: diagonal blocks only
        for b in range(batch):
            attn_ref[b, h, :, :] = a[b * seq:(b + 1) * seq, b * seq:(b + 1) * seq]

        ctx_parts.append(jnp.dot(a, vh, preferred_element_type=f32))        # (B*S, dv)

    # single output projection: (B*S, H*dv) @ (H*dv, d_model)
    ctx = jnp.concatenate(ctx_parts, axis=1)
    mha_pre = jnp.dot(ctx, wo_ref[...], preferred_element_type=f32)

    # dropout: inference-mode identity.
    mha = _layer_norm(mha_pre + b_o + x, g_mha, be_mha)        # MHA residual + LN
    enc_self = _layer_norm(mha + x, g_enc, be_enc)             # EncoderLayer LN #1

    # position-wise FFN (Conv1d k=1 == per-position Linear), weights pre-transposed
    hid = jnp.maximum(
        jnp.dot(enc_self, w1_ref[...], preferred_element_type=f32) + b_1, 0.0)
    ffn = jnp.dot(hid, w2_ref[...], preferred_element_type=f32) + b_2
    ffn = _layer_norm(ffn + enc_self, g_ffn, be_ffn)           # FFN residual + LN
    out_ref[...] = _layer_norm(ffn + enc_self, g_enc, be_enc)  # EncoderLayer LN #2 (shared)


# ----------------------------------------------------------------------------
# one-time host-side weight fusing / packing (hoisted out of the per-call path)
# ----------------------------------------------------------------------------
def prepare_params(p, cfg):
    D, H = cfg["d_model"], cfg["n_heads"]
    dk, dv, dff = cfg["d_k"], cfg["d_v"], cfg["d_ff"]
    HK, HV = H * dk, H * dv
    inv_sqrt_dk = 1.0 / math.sqrt(dk)

    # fused Q|K|V weight (pre-transposed), with 1/sqrt(d_k) folded into Q
    wqkv = jnp.concatenate(
        [p["wq"].T * inv_sqrt_dk, p["wk"].T, p["wv"].T], axis=1)   # (D, 2*HK+HV)
    wo_t = p["wo"].T                                               # (HV, D)
    w1_t = p["w1"].T                                               # (D, dff)
    w2_t = p["w2"].T                                               # (dff, D)

    pack_w = max(2 * HK + HV, dff, D)

    def row(v):
        v = jnp.asarray(v, jnp.float32).reshape(-1)
        return jnp.pad(v, (0, pack_w - v.shape[0]))[None, :]

    small = jnp.concatenate([
        row(jnp.concatenate([p["bq"] * inv_sqrt_dk, p["bk"], p["bv"]])),  # 0: fused QKV bias
        row(p["b1"]),                                        # 1
        row(p["bo"]), row(p["b2"]),                          # 2, 3
        row(p["g_mha"]), row(p["b_mha"]),                    # 4, 5
        row(p["g_enc"]), row(p["b_enc"]),                    # 6, 7
        row(p["g_ffn"]), row(p["b_ffn"]),                    # 8, 9
    ], axis=0)                                               # (10, pack_w)

    return dict(wqkv=wqkv, wo_t=wo_t, w1_t=w1_t, w2_t=w2_t, small=small)


# ----------------------------------------------------------------------------
# jitted forward: mask build + single pallas_call inside one XLA program
# ----------------------------------------------------------------------------
def make_encoder_layer(cfg, batch, seq):
    D, H = cfg["d_model"], cfg["n_heads"]
    dk, dv, dff = cfg["d_k"], cfg["d_v"], cfg["d_ff"]
    HK, HV = H * dk, H * dv
    BS = batch * seq
    use_approx = _supports_approx_reciprocal()

    kernel = partial(
        encoder_layer_kernel,
        n_heads=H, d_k=dk, d_v=dv, d_model=D, d_ff=dff,
        batch=batch, seq=seq, use_approx_recip=use_approx,
    )

    # advisory cost estimate so XLA schedules sensibly around the custom call
    flops = (2 * BS * D * (2 * HK + HV)              # fused QKV projection
             + H * (2 * BS * BS * dk + 2 * BS * BS * dv)  # scores + context
             + 2 * BS * HV * D                       # output projection
             + 2 * BS * D * dff + 2 * BS * dff * D)  # FFN
    transcendentals = H * BS * BS + H * BS + 4 * BS  # exp + reciprocal + rsqrt
    bytes_accessed = 4 * (BS * D + BS * BS + D * (2 * HK + HV) + HV * D
                          + D * dff + dff * D + 10 * max(2 * HK + HV, dff, D)
                          + BS * D + batch * H * seq * seq)

    vmem = pl.BlockSpec(memory_space=pltpu.MemorySpace.VMEM)
    call = pl.pallas_call(
        kernel,
        out_shape=[
            jax.ShapeDtypeStruct((BS, D), jnp.float32),
            jax.ShapeDtypeStruct((batch, H, seq, seq), jnp.float32),
        ],
        # single invocation (no grid): every operand is one whole-array VMEM block
        in_specs=[vmem] * 7,
        out_specs=[vmem, vmem],
        cost_estimate=pl.CostEstimate(flops=flops, transcendentals=transcendentals,
                                      bytes_accessed=bytes_accessed),
    )

    @jax.jit
    def fwd(x, mask_bool, wqkv, wo_t, w1_t, w2_t, small):
        # block-diagonal ADDITIVE mask over the flattened B*S rows:
        # 0 where (same batch AND not user-masked), -1e9 elsewhere.  Built under
        # jit so no eager ops are dispatched per call.
        keep = jnp.einsum(
            "bij,bc->bicj",
            (~mask_bool).astype(jnp.float32),
            jnp.eye(batch, dtype=jnp.float32),
        ).reshape(BS, BS)
        mask_add = jnp.where(keep > 0.5, jnp.float32(0.0), jnp.float32(-1e9))

        out_flat, attn = call(x.reshape(BS, D), mask_add,
                              wqkv, wo_t, w1_t, w2_t, small)
        return out_flat.reshape(batch, seq, D), attn

    return fwd


# ----------------------------------------------------------------------------
# pure-JAX reference (PyTorch semantics, HIGHEST matmul precision)
# ----------------------------------------------------------------------------
def _layer_norm_ref(x, gamma, beta, eps=1e-6):
    mean = jnp.mean(x, axis=-1, keepdims=True)
    var = jnp.mean((x - mean) ** 2, axis=-1, keepdims=True)
    return (x - mean) / jnp.sqrt(var + eps) * gamma + beta


def encoder_layer_ref(x, mask_bool, p, cfg):
    B, S, D = x.shape
    H, dk, dv = cfg["n_heads"], cfg["d_k"], cfg["d_v"]
    hi = jax.lax.Precision.HIGHEST

    def lin(t, w, b):   # nn.Linear / Conv1d(k=1): t @ w.T + b
        return jnp.einsum("bsd,od->bso", t, w, precision=hi) + b

    q = lin(x, p["wq"], p["bq"]).reshape(B, S, H, dk).transpose(0, 2, 1, 3)
    k = lin(x, p["wk"], p["bk"]).reshape(B, S, H, dk).transpose(0, 2, 1, 3)
    v = lin(x, p["wv"], p["bv"]).reshape(B, S, H, dv).transpose(0, 2, 1, 3)

    scores = jnp.einsum("bhqd,bhkd->bhqk", q, k, precision=hi) / math.sqrt(dk)
    scores = jnp.where(mask_bool[:, None, :, :], -1e9, scores)
    attn = jax.nn.softmax(scores, axis=-1)
    ctx = jnp.einsum("bhqk,bhkd->bhqd", attn, v, precision=hi)
    ctx = ctx.transpose(0, 2, 1, 3).reshape(B, S, H * dv)

    mha = _layer_norm_ref(lin(ctx, p["wo"], p["bo"]) + x, p["g_mha"], p["b_mha"])
    enc = _layer_norm_ref(mha + x, p["g_enc"], p["b_enc"])
    hid = jnp.maximum(lin(enc, p["w1"], p["b1"]), 0.0)
    ffn = _layer_norm_ref(lin(hid, p["w2"], p["b2"]) + enc, p["g_ffn"], p["b_ffn"])
    out = _layer_norm_ref(ffn + enc, p["g_enc"], p["b_enc"])
    return out, attn


# ----------------------------------------------------------------------------
# main
# ----------------------------------------------------------------------------
if __name__ == "__main__":
    cfg = CONFIG
    D, dk, dv = cfg["d_model"], cfg["d_k"], cfg["d_v"]
    H, dff = cfg["n_heads"], cfg["d_ff"]

    key = jax.random.PRNGKey(0)
    ks = jax.random.split(key, 20)

    def w_init(k, o, i):
        s = 1.0 / math.sqrt(i)
        return jax.random.uniform(k, (o, i), jnp.float32, -s, s)

    def b_init(k, o, i):
        s = 1.0 / math.sqrt(i)
        return jax.random.uniform(k, (o,), jnp.float32, -s, s)

    p = dict(
        wq=w_init(ks[0], H * dk, D), bq=b_init(ks[1], H * dk, D),
        wk=w_init(ks[2], H * dk, D), bk=b_init(ks[3], H * dk, D),
        wv=w_init(ks[4], H * dv, D), bv=b_init(ks[5], H * dv, D),
        wo=w_init(ks[6], D, H * dv), bo=b_init(ks[7], D, H * dv),
        w1=w_init(ks[8], dff, D), b1=b_init(ks[9], dff, D),
        w2=w_init(ks[10], D, dff), b2=b_init(ks[11], D, dff),
        g_mha=1.0 + 0.1 * jax.random.normal(ks[12], (D,), jnp.float32),
        b_mha=0.1 * jax.random.normal(ks[13], (D,), jnp.float32),
        g_enc=1.0 + 0.1 * jax.random.normal(ks[14], (D,), jnp.float32),
        b_enc=0.1 * jax.random.normal(ks[15], (D,), jnp.float32),
        g_ffn=1.0 + 0.1 * jax.random.normal(ks[16], (D,), jnp.float32),
        b_ffn=0.1 * jax.random.normal(ks[17], (D,), jnp.float32),
    )

    x = jax.random.normal(ks[18], (BATCH, SEQ, D), jnp.float32)
    # attention mask: True where masked (last two key positions)
    mask_bool = jnp.zeros((BATCH, SEQ, SEQ), jnp.bool_).at[:, :, -2:].set(True)

    # one-time prep (constant across calls) + jitted forward
    packed = prepare_params(p, cfg)
    fwd = make_encoder_layer(cfg, BATCH, SEQ)

    out, attn = fwd(x, mask_bool, packed["wqkv"], packed["wo_t"],
                    packed["w1_t"], packed["w2_t"], packed["small"])
    out = jax.block_until_ready(out)
    attn = jax.block_until_ready(attn)

    out_ref, attn_ref = encoder_layer_ref(x, mask_bool, p, cfg)

    assert out.shape == (BATCH, SEQ, D)
    assert attn.shape == (BATCH, H, SEQ, SEQ)
    # Tolerance budget: the approximate EUP reciprocal (enabled on v6e/v7x) and
    # possible MXU f32 pass differences vs. the HIGHEST-precision reference;
    # genuine layout/semantic bugs give O(1) errors.
    assert jnp.allclose(out, out_ref, atol=1e-2, rtol=1e-2)
    assert jnp.allclose(attn, attn_ref, atol=1e-2, rtol=1e-2)

    print("KERNEL_OK")
</pallas_src>

<mosaic_0001>
module attributes {stable_mosaic.version = 11 : i64} {
  func.func @encoder_layer_kernel(%arg0: memref<16x32xf32, #tpu.memory_space<vmem>>, %arg1: memref<16x16xf32, #tpu.memory_space<vmem>>, %arg2: memref<32x96xf32, #tpu.memory_space<vmem>>, %arg3: memref<32x32xf32, #tpu.memory_space<vmem>>, %arg4: memref<32x64xf32, #tpu.memory_space<vmem>>, %arg5: memref<64x32xf32, #tpu.memory_space<vmem>>, %arg6: memref<10x96xf32, #tpu.memory_space<vmem>>, %arg7: memref<16x32xf32, #tpu.memory_space<vmem>>, %arg8: memref<2x4x8x8xf32, #tpu.memory_space<vmem>>) attributes {dimension_semantics = [], scalar_prefetch = 0 : i64, scratch_operands = 0 : i64, tpu.core_type = #tpu.core_type<tc>} {
    %c0 = arith.constant 0 : index
    %c0_0 = arith.constant 0 : index
    %0 = vector.load %arg0[%c0, %c0_0] : memref<16x32xf32, #tpu.memory_space<vmem>>, vector<16x32xf32>
    %c0_1 = arith.constant 0 : index
    %c0_2 = arith.constant 0 : index
    %1 = vector.load %arg1[%c0_1, %c0_2] : memref<16x16xf32, #tpu.memory_space<vmem>>, vector<16x16xf32>
    %c0_3 = arith.constant 0 : index
    %c0_4 = arith.constant 0 : index
    %2 = vector.load %arg6[%c0_3, %c0_4] : memref<10x96xf32, #tpu.memory_space<vmem>>, vector<10x96xf32>
    %3 = vector.extract_strided_slice %2 {offsets = [0, 0], sizes = [1, 96], strides = [1, 1]} : vector<10x96xf32> to vector<1x96xf32>
    %4 = vector.extract_strided_slice %2 {offsets = [1, 0], sizes = [1, 64], strides = [1, 1]} : vector<10x96xf32> to vector<1x64xf32>
    %5 = vector.extract_strided_slice %2 {offsets = [2, 0], sizes = [1, 32], strides = [1, 1]} : vector<10x96xf32> to vector<1x32xf32>
    %6 = vector.extract_strided_slice %2 {offsets = [3, 0], sizes = [1, 32], strides = [1, 1]} : vector<10x96xf32> to vector<1x32xf32>
    %7 = vector.extract_strided_slice %2 {offsets = [4, 0], sizes = [1, 32], strides = [1, 1]} : vector<10x96xf32> to vector<1x32xf32>
    %8 = vector.extract_strided_slice %2 {offsets = [5, 0], sizes = [1, 32], strides = [1, 1]} : vector<10x96xf32> to vector<1x32xf32>
    %9 = vector.extract_strided_slice %2 {offsets = [6, 0], sizes = [1, 32], strides = [1, 1]} : vector<10x96xf32> to vector<1x32xf32>
    %10 = vector.extract_strided_slice %2 {offsets = [7, 0], sizes = [1, 32], strides = [1, 1]} : vector<10x96xf32> to vector<1x32xf32>
    %11 = vector.extract_strided_slice %2 {offsets = [8, 0], sizes = [1, 32], strides = [1, 1]} : vector<10x96xf32> to vector<1x32xf32>
    %12 = vector.extract_strided_slice %2 {offsets = [9, 0], sizes = [1, 32], strides = [1, 1]} : vector<10x96xf32> to vector<1x32xf32>
    %c0_5 = arith.constant 0 : index
    %c0_6 = arith.constant 0 : index
    %13 = vector.load %arg2[%c0_5, %c0_6] : memref<32x96xf32, #tpu.memory_space<vmem>>, vector<32x96xf32>
    %cst = arith.constant dense<0.000000e+00> : vector<16x96xf32>
    %14 = tpu.matmul %0, %13, %cst {dimension_numbers = #tpu.dot_dimension_numbers<[1], [0], [0], [1], [0, 0, 1, 1], [], []>} : vector<16x32xf32>, vector<32x96xf32>, vector<16x96xf32> -> vector<16x96xf32>
    %15 = vector.broadcast %3 : vector<1x96xf32> to vector<16x96xf32>
    %16 = arith.addf %14, %15 : vector<16x96xf32>
    %17 = vector.extract_strided_slice %16 {offsets = [0, 0], sizes = [16, 8], strides = [1, 1]} : vector<16x96xf32> to vector<16x8xf32>
    %18 = vector.extract_strided_slice %16 {offsets = [0, 32], sizes = [16, 8], strides = [1, 1]} : vector<16x96xf32> to vector<16x8xf32>
    %19 = vector.extract_strided_slice %16 {offsets = [0, 64], sizes = [16, 8], strides = [1, 1]} : vector<16x96xf32> to vector<16x8xf32>
    %cst_7 = arith.constant dense<0.000000e+00> : vector<16x16xf32>
    %20 = tpu.matmul %17, %18, %cst_7 {dimension_numbers = #tpu.dot_dimension_numbers<[1], [1], [0], [0], [0, 0, 1, 0], [], []>} : vector<16x8xf32>, vector<16x8xf32>, vector<16x16xf32> -> vector<16x16xf32>
    %21 = arith.addf %20, %1 : vector<16x16xf32>
    %cst_8 = arith.constant dense<0xFF800000> : vector<16xf32>
    %22 = vector.multi_reduction <maximumf>, %21, %cst_8 [1] : vector<16x16xf32> to vector<16xf32>
    %23 = vector.shape_cast %22 : vector<16xf32> to vector<16x1xf32>
    %24 = vector.broadcast %23 : vector<16x1xf32> to vector<16x16xf32>
    %25 = arith.subf %21, %24 : vector<16x16xf32>
    %26 = math.exp %25 : vector<16x16xf32>
    %cst_9 = arith.constant dense<0.000000e+00> : vector<16xf32>
    %27 = vector.multi_reduction <add>, %26, %cst_9 [1] : vector<16x16xf32> to vector<16xf32>
    %28 = vector.shape_cast %27 : vector<16xf32> to vector<16x1xf32>
    %29 = tpu.reciprocal %28 : vector<16x1xf32> -> vector<16x1xf32>
    %30 = vector.broadcast %29 : vector<16x1xf32> to vector<16x16xf32>
    %31 = arith.mulf %26, %30 : vector<16x16xf32>
    %32 = vector.extract_strided_slice %31 {offsets = [0, 0], sizes = [8, 8], strides = [1, 1]} : vector<16x16xf32> to vector<8x8xf32>
    %c0_10 = arith.constant 0 : index
    %c0_11 = arith.constant 0 : index
    %c0_12 = arith.constant 0 : index
    %c0_13 = arith.constant 0 : index
    %33 = vector.load %arg8[%c0_10, %c0_11, %c0_12, %c0_13] : memref<2x4x8x8xf32, #tpu.memory_space<vmem>>, vector<1x1x8x8xf32>
    %34 = vector.shape_cast %33 : vector<1x1x8x8xf32> to vector<8x8xf32>
    %35 = vector.shape_cast %32 : vector<8x8xf32> to vector<1x1x8x8xf32>
    tpu.vector_store %arg8[%c0_10, %c0_11, %c0_12, %c0_13], %35 {strides = array<i32>} : memref<2x4x8x8xf32, #tpu.memory_space<vmem>>, vector<1x1x8x8xf32>,
    %36 = vector.extract_strided_slice %31 {offsets = [8, 8], sizes = [8, 8], strides = [1, 1]} : vector<16x16xf32> to vector<8x8xf32>
    %c1 = arith.constant 1 : index
    %c0_14 = arith.constant 0 : index
    %c0_15 = arith.constant 0 : index
    %c0_16 = arith.constant 0 : index
    %37 = vector.load %arg8[%c1, %c0_14, %c0_15, %c0_16] : memref<2x4x8x8xf32, #tpu.memory_space<vmem>>, vector<1x1x8x8xf32>
    %38 = vector.shape_cast %37 : vector<1x1x8x8xf32> to vector<8x8xf32>
    %39 = vector.shape_cast %36 : vector<8x8xf32> to vector<1x1x8x8xf32>
    tpu.vector_store %arg8[%c1, %c0_14, %c0_15, %c0_16], %39 {strides = array<i32>} : memref<2x4x8x8xf32, #tpu.memory_space<vmem>>, vector<1x1x8x8xf32>,
    %cst_17 = arith.constant dense<0.000000e+00> : vector<16x8xf32>
    %40 = tpu.matmul %31, %19, %cst_17 {dimension_numbers = #tpu.dot_dimension_numbers<[1], [0], [0], [1], [0, 0, 1, 1], [], []>} : vector<16x16xf32>, vector<16x8xf32>, vector<16x8xf32> -> vector<16x8xf32>
    %41 = vector.extract_strided_slice %16 {offsets = [0, 8], sizes = [16, 8], strides = [1, 1]} : vector<16x96xf32> to vector<16x8xf32>
    %42 = vector.extract_strided_slice %16 {offsets = [0, 40], sizes = [16, 8], strides = [1, 1]} : vector<16x96xf32> to vector<16x8xf32>
    %43 = vector.extract_strided_slice %16 {offsets = [0, 72], sizes = [16, 8], strides = [1, 1]} : vector<16x96xf32> to vector<16x8xf32>
    %cst_18 = arith.constant dense<0.000000e+00> : vector<16x16xf32>
    %44 = tpu.matmul %41, %42, %cst_18 {dimension_numbers = #tpu.dot_dimension_numbers<[1], [1], [0], [0], [0, 0, 1, 0], [], []>} : vector<16x8xf32>, vector<16x8xf32>, vector<16x16xf32> -> vector<16x16xf32>
    %45 = arith.addf %44, %1 : vector<16x16xf32>
    %cst_19 = arith.constant dense<0xFF800000> : vector<16xf32>
    %46 = vector.multi_reduction <maximumf>, %45, %cst_19 [1] : vector<16x16xf32> to vector<16xf32>
    %47 = vector.shape_cast %46 : vector<16xf32> to vector<16x1xf32>
    %48 = vector.broadcast %47 : vector<16x1xf32> to vector<16x16xf32>
    %49 = arith.subf %45, %48 : vector<16x16xf32>
    %50 = math.exp %49 : vector<16x16xf32>
    %cst_20 = arith.constant dense<0.000000e+00> : vector<16xf32>
    %51 = vector.multi_reduction <add>, %50, %cst_20 [1] : vector<16x16xf32> to vector<16xf32>
    %52 = vector.shape_cast %51 : vector<16xf32> to vector<16x1xf32>
    %53 = tpu.reciprocal %52 : vector<16x1xf32> -> vector<16x1xf32>
    %54 = vector.broadcast %53 : vector<16x1xf32> to vector<16x16xf32>
    %55 = arith.mulf %50, %54 : vector<16x16xf32>
    %56 = vector.extract_strided_slice %55 {offsets = [0, 0], sizes = [8, 8], strides = [1, 1]} : vector<16x16xf32> to vector<8x8xf32>
    %c0_21 = arith.constant 0 : index
    %c1_22 = arith.constant 1 : index
    %c0_23 = arith.constant 0 : index
    %c0_24 = arith.constant 0 : index
    %57 = vector.load %arg8[%c0_21, %c1_22, %c0_23, %c0_24] : memref<2x4x8x8xf32, #tpu.memory_space<vmem>>, vector<1x1x8x8xf32>
    %58 = vector.shape_cast %57 : vector<1x1x8x8xf32> to vector<8x8xf32>
    %59 = vector.shape_cast %56 : vector<8x8xf32> to vector<1x1x8x8xf32>
    tpu.vector_store %arg8[%c0_21, %c1_22, %c0_23, %c0_24], %59 {strides = array<i32>} : memref<2x4x8x8xf32, #tpu.memory_space<vmem>>, vector<1x1x8x8xf32>,
    %60 = vector.extract_strided_slice %55 {offsets = [8, 8], sizes = [8, 8], strides = [1, 1]} : vector<16x16xf32> to vector<8x8xf32>
    %c1_25 = arith.constant 1 : index
    %c1_26 = arith.constant 1 : index
    %c0_27 = arith.constant 0 : index
    %c0_28 = arith.constant 0 : index
    %61 = vector.load %arg8[%c1_25, %c1_26, %c0_27, %c0_28] : memref<2x4x8x8xf32, #tpu.memory_space<vmem>>, vector<1x1x8x8xf32>
    %62 = vector.shape_cast %61 : vector<1x1x8x8xf32> to vector<8x8xf32>
    %63 = vector.shape_cast %60 : vector<8x8xf32> to vector<1x1x8x8xf32>
    tpu.vector_store %arg8[%c1_25, %c1_26, %c0_27, %c0_28], %63 {strides = array<i32>} : memref<2x4x8x8xf32, #tpu.memory_space<vmem>>, vector<1x1x8x8xf32>,
    %cst_29 = arith.constant dense<0.000000e+00> : vector<16x8xf32>
    %64 = tpu.matmul %55, %43, %cst_29 {dimension_numbers = #tpu.dot_dimension_numbers<[1], [0], [0], [1], [0, 0, 1, 1], [], []>} : vector<16x16xf32>, vector<16x8xf32>, vector<16x8xf32> -> vector<16x8xf32>
    %65 = vector.extract_strided_slice %16 {offsets = [0, 16], sizes = [16, 8], strides = [1, 1]} : vector<16x96xf32> to vector<16x8xf32>
    %66 = vector.extract_strided_slice %16 {offsets = [0, 48], sizes = [16, 8], strides = [1, 1]} : vector<16x96xf32> to vector<16x8xf32>
    %67 = vector.extract_strided_slice %16 {offsets = [0, 80], sizes = [16, 8], strides = [1, 1]} : vector<16x96xf32> to vector<16x8xf32>
    %cst_30 = arith.constant dense<0.000000e+00> : vector<16x16xf32>
    %68 = tpu.matmul %65, %66, %cst_30 {dimension_numbers = #tpu.dot_dimension_numbers<[1], [1], [0], [0], [0, 0, 1, 0], [], []>} : vector<16x8xf32>, vector<16x8xf32>, vector<16x16xf32> -> vector<16x16xf32>
    %69 = arith.addf %68, %1 : vector<16x16xf32>
    %cst_31 = arith.constant dense<0xFF800000> : vector<16xf32>
    %70 = vector.multi_reduction <maximumf>, %69, %cst_31 [1] : vector<16x16xf32> to vector<16xf32>
    %71 = vector.shape_cast %70 : vector<16xf32> to vector<16x1xf32>
    %72 = vector.broadcast %71 : vector<16x1xf32> to vector<16x16xf32>
    %73 = arith.subf %69, %72 : vector<16x16xf32>
    %74 = math.exp %73 : vector<16x16xf32>
    %cst_32 = arith.constant dense<0.000000e+00> : vector<16xf32>
    %75 = vector.multi_reduction <add>, %74, %cst_32 [1] : vector<16x16xf32> to vector<16xf32>
    %76 = vector.shape_cast %75 : vector<16xf32> to vector<16x1xf32>
    %77 = tpu.reciprocal %76 : vector<16x1xf32> -> vector<16x1xf32>
    %78 = vector.broadcast %77 : vector<16x1xf32> to vector<16x16xf32>
    %79 = arith.mulf %74, %78 : vector<16x16xf32>
    %80 = vector.extract_strided_slice %79 {offsets = [0, 0], sizes = [8, 8], strides = [1, 1]} : vector<16x16xf32> to vector<8x8xf32>
    %c0_33 = arith.constant 0 : index
    %c2 = arith.constant 2 : index
    %c0_34 = arith.constant 0 : index
    %c0_35 = arith.constant 0 : index
    %81 = vector.load %arg8[%c0_33, %c2, %c0_34, %c0_35] : memref<2x4x8x8xf32, #tpu.memory_space<vmem>>, vector<1x1x8x8xf32>
    %82 = vector.shape_cast %81 : vector<1x1x8x8xf32> to vector<8x8xf32>
    %83 = vector.shape_cast %80 : vector<8x8xf32> to vector<1x1x8x8xf32>
    tpu.vector_store %arg8[%c0_33, %c2, %c0_34, %c0_35], %83 {strides = array<i32>} : memref<2x4x8x8xf32, #tpu.memory_space<vmem>>, vector<1x1x8x8xf32>,
    %84 = vector.extract_strided_slice %79 {offsets = [8, 8], sizes = [8, 8], strides = [1, 1]} : vector<16x16xf32> to vector<8x8xf32>
    %c1_36 = arith.constant 1 : index
    %c2_37 = arith.constant 2 : index
    %c0_38 = arith.constant 0 : index
    %c0_39 = arith.constant 0 : index
    %85 = vector.load %arg8[%c1_36, %c2_37, %c0_38, %c0_39] : memref<2x4x8x8xf32, #tpu.memory_space<vmem>>, vector<1x1x8x8xf32>
    %86 = vector.shape_cast %85 : vector<1x1x8x8xf32> to vector<8x8xf32>
    %87 = vector.shape_cast %84 : vector<8x8xf32> to vector<1x1x8x8xf32>
    tpu.vector_store %arg8[%c1_36, %c2_37, %c0_38, %c0_39], %87 {strides = array<i32>} : memref<2x4x8x8xf32, #tpu.memory_space<vmem>>, vector<1x1x8x8xf32>,
    %cst_40 = arith.constant dense<0.000000e+00> : vector<16x8xf32>
    %88 = tpu.matmul %79, %67, %cst_40 {dimension_numbers = #tpu.dot_dimension_numbers<[1], [0], [0], [1], [0, 0, 1, 1], [], []>} : vector<16x16xf32>, vector<16x8xf32>, vector<16x8xf32> -> vector<16x8xf32>
    %89 = vector.extract_strided_slice %16 {offsets = [0, 24], sizes = [16, 8], strides = [1, 1]} : vector<16x96xf32> to vector<16x8xf32>
    %90 = vector.extract_strided_slice %16 {offsets = [0, 56], sizes = [16, 8], strides = [1, 1]} : vector<16x96xf32> to vector<16x8xf32>
    %91 = vector.extract_strided_slice %16 {offsets = [0, 88], sizes = [16, 8], strides = [1, 1]} : vector<16x96xf32> to vector<16x8xf32>
    %cst_41 = arith.constant dense<0.000000e+00> : vector<16x16xf32>
    %92 = tpu.matmul %89, %90, %cst_41 {dimension_numbers = #tpu.dot_dimension_numbers<[1], [1], [0], [0], [0, 0, 1, 0], [], []>} : vector<16x8xf32>, vector<16x8xf32>, vector<16x16xf32> -> vector<16x16xf32>
    %93 = arith.addf %92, %1 : vector<16x16xf32>
    %cst_42 = arith.constant dense<0xFF800000> : vector<16xf32>
    %94 = vector.multi_reduction <maximumf>, %93, %cst_42 [1] : vector<16x16xf32> to vector<16xf32>
    %95 = vector.shape_cast %94 : vector<16xf32> to vector<16x1xf32>
    %96 = vector.broadcast %95 : vector<16x1xf32> to vector<16x16xf32>
    %97 = arith.subf %93, %96 : vector<16x16xf32>
    %98 = math.exp %97 : vector<16x16xf32>
    %cst_43 = arith.constant dense<0.000000e+00> : vector<16xf32>
    %99 = vector.multi_reduction <add>, %98, %cst_43 [1] : vector<16x16xf32> to vector<16xf32>
    %100 = vector.shape_cast %99 : vector<16xf32> to vector<16x1xf32>
    %101 = tpu.reciprocal %100 : vector<16x1xf32> -> vector<16x1xf32>
    %102 = vector.broadcast %101 : vector<16x1xf32> to vector<16x16xf32>
    %103 = arith.mulf %98, %102 : vector<16x16xf32>
    %104 = vector.extract_strided_slice %103 {offsets = [0, 0], sizes = [8, 8], strides = [1, 1]} : vector<16x16xf32> to vector<8x8xf32>
    %c0_44 = arith.constant 0 : index
    %c3 = arith.constant 3 : index
    %c0_45 = arith.constant 0 : index
    %c0_46 = arith.constant 0 : index
    %105 = vector.load %arg8[%c0_44, %c3, %c0_45, %c0_46] : memref<2x4x8x8xf32, #tpu.memory_space<vmem>>, vector<1x1x8x8xf32>
    %106 = vector.shape_cast %105 : vector<1x1x8x8xf32> to vector<8x8xf32>
    %107 = vector.shape_cast %104 : vector<8x8xf32> to vector<1x1x8x8xf32>
    tpu.vector_store %arg8[%c0_44, %c3, %c0_45, %c0_46], %107 {strides = array<i32>} : memref<2x4x8x8xf32, #tpu.memory_space<vmem>>, vector<1x1x8x8xf32>,
    %108 = vector.extract_strided_slice %103 {offsets = [8, 8], sizes = [8, 8], strides = [1, 1]} : vector<16x16xf32> to vector<8x8xf32>
    %c1_47 = arith.constant 1 : index
    %c3_48 = arith.constant 3 : index
    %c0_49 = arith.constant 0 : index
    %c0_50 = arith.constant 0 : index
    %109 = vector.load %arg8[%c1_47, %c3_48, %c0_49, %c0_50] : memref<2x4x8x8xf32, #tpu.memory_space<vmem>>, vector<1x1x8x8xf32>
    %110 = vector.shape_cast %109 : vector<1x1x8x8xf32> to vector<8x8xf32>
    %111 = vector.shape_cast %108 : vector<8x8xf32> to vector<1x1x8x8xf32>
    tpu.vector_store %arg8[%c1_47, %c3_48, %c0_49, %c0_50], %111 {strides = array<i32>} : memref<2x4x8x8xf32, #tpu.memory_space<vmem>>, vector<1x1x8x8xf32>,
    %cst_51 = arith.constant dense<0.000000e+00> : vector<16x8xf32>
    %112 = tpu.matmul %103, %91, %cst_51 {dimension_numbers = #tpu.dot_dimension_numbers<[1], [0], [0], [1], [0, 0, 1, 1], [], []>} : vector<16x16xf32>, vector<16x8xf32>, vector<16x8xf32> -> vector<16x8xf32>
    %113 = tpu.concatenate %40, %64, %88, %112 in 1 : vector<16x8xf32>, vector<16x8xf32>, vector<16x8xf32>, vector<16x8xf32> -> vector<16x32xf32>
    %c0_52 = arith.constant 0 : index
    %c0_53 = arith.constant 0 : index
    %114 = vector.load %arg3[%c0_52, %c0_53] : memref<32x32xf32, #tpu.memory_space<vmem>>, vector<32x32xf32>
    %cst_54 = arith.constant dense<0.000000e+00> : vector<16x32xf32>
    %115 = tpu.matmul %113, %114, %cst_54 {dimension_numbers = #tpu.dot_dimension_numbers<[1], [0], [0], [1], [0, 0, 1, 1], [], []>} : vector<16x32xf32>, vector<32x32xf32>, vector<16x32xf32> -> vector<16x32xf32>
    %116 = vector.broadcast %5 : vector<1x32xf32> to vector<16x32xf32>
    %117 = arith.addf %115, %116 : vector<16x32xf32>
    %118 = arith.addf %117, %0 : vector<16x32xf32>
    %cst_55 = arith.constant dense<0.000000e+00> : vector<16xf32>
    %119 = vector.multi_reduction <add>, %118, %cst_55 [1] : vector<16x32xf32> to vector<16xf32>
    %120 = vector.shape_cast %119 : vector<16xf32> to vector<16x1xf32>
    %cst_56 = arith.constant 3.200000e+01 : f32
    %121 = vector.broadcast %cst_56 : f32 to vector<16x1xf32>
    %122 = arith.divf %120, %121 : vector<16x1xf32>
    %123 = vector.broadcast %122 : vector<16x1xf32> to vector<16x32xf32>
    %124 = arith.subf %118, %123 : vector<16x32xf32>
    %125 = arith.mulf %124, %124 : vector<16x32xf32>
    %cst_57 = arith.constant dense<0.000000e+00> : vector<16xf32>
    %126 = vector.multi_reduction <add>, %125, %cst_57 [1] : vector<16x32xf32> to vector<16xf32>
    %127 = vector.shape_cast %126 : vector<16xf32> to vector<16x1xf32>
    %cst_58 = arith.constant 3.200000e+01 : f32
    %128 = vector.broadcast %cst_58 : f32 to vector<16x1xf32>
    %129 = arith.divf %127, %128 : vector<16x1xf32>
    %130 = vector.broadcast %122 : vector<16x1xf32> to vector<16x32xf32>
    %131 = arith.subf %118, %130 : vector<16x32xf32>
    %cst_59 = arith.constant 9.99999997E-7 : f32
    %132 = vector.broadcast %cst_59 : f32 to vector<16x1xf32>
    %133 = arith.addf %129, %132 : vector<16x1xf32>
    %134 = math.rsqrt %133 : vector<16x1xf32>
    %135 = vector.broadcast %134 : vector<16x1xf32> to vector<16x32xf32>
    %136 = arith.mulf %131, %135 : vector<16x32xf32>
    %137 = vector.broadcast %7 : vector<1x32xf32> to vector<16x32xf32>
    %138 = arith.mulf %136, %137 : vector<16x32xf32>
    %139 = vector.broadcast %8 : vector<1x32xf32> to vector<16x32xf32>
    %140 = arith.addf %138, %139 : vector<16x32xf32>
    %141 = arith.addf %140, %0 : vector<16x32xf32>
    %cst_60 = arith.constant dense<0.000000e+00> : vector<16xf32>
    %142 = vector.multi_reduction <add>, %141, %cst_60 [1] : vector<16x32xf32> to vector<16xf32>
    %143 = vector.shape_cast %142 : vector<16xf32> to vector<16x1xf32>
    %cst_61 = arith.constant 3.200000e+01 : f32
    %144 = vector.broadcast %cst_61 : f32 to vector<16x1xf32>
    %145 = arith.divf %143, %144 : vector<16x1xf32>
    %146 = vector.broadcast %145 : vector<16x1xf32> to vector<16x32xf32>
    %147 = arith.subf %141, %146 : vector<16x32xf32>
    %148 = arith.mulf %147, %147 : vector<16x32xf32>
    %cst_62 = arith.constant dense<0.000000e+00> : vector<16xf32>
    %149 = vector.multi_reduction <add>, %148, %cst_62 [1] : vector<16x32xf32> to vector<16xf32>
    %150 = vector.shape_cast %149 : vector<16xf32> to vector<16x1xf32>
    %cst_63 = arith.constant 3.200000e+01 : f32
    %151 = vector.broadcast %cst_63 : f32 to vector<16x1xf32>
    %152 = arith.divf %150, %151 : vector<16x1xf32>
    %153 = vector.broadcast %145 : vector<16x1xf32> to vector<16x32xf32>
    %154 = arith.subf %141, %153 : vector<16x32xf32>
    %cst_64 = arith.constant 9.99999997E-7 : f32
    %155 = vector.broadcast %cst_64 : f32 to vector<16x1xf32>
    %156 = arith.addf %152, %155 : vector<16x1xf32>
    %157 = math.rsqrt %156 : vector<16x1xf32>
    %158 = vector.broadcast %157 : vector<16x1xf32> to vector<16x32xf32>
    %159 = arith.mulf %154, %158 : vector<16x32xf32>
    %160 = vector.broadcast %9 : vector<1x32xf32> to vector<16x32xf32>
    %161 = arith.mulf %159, %160 : vector<16x32xf32>
    %162 = vector.broadcast %10 : vector<1x32xf32> to vector<16x32xf32>
    %163 = arith.addf %161, %162 : vector<16x32xf32>
    %c0_65 = arith.constant 0 : index
    %c0_66 = arith.constant 0 : index
    %164 = vector.load %arg4[%c0_65, %c0_66] : memref<32x64xf32, #tpu.memory_space<vmem>>, vector<32x64xf32>
    %cst_67 = arith.constant dense<0.000000e+00> : vector<16x64xf32>
    %165 = tpu.matmul %163, %164, %cst_67 {dimension_numbers = #tpu.dot_dimension_numbers<[1], [0], [0], [1], [0, 0, 1, 1], [], []>} : vector<16x32xf32>, vector<32x64xf32>, vector<16x64xf32> -> vector<16x64xf32>
    %166 = vector.broadcast %4 : vector<1x64xf32> to vector<16x64xf32>
    %167 = arith.addf %165, %166 : vector<16x64xf32>
    %cst_68 = arith.constant 0.000000e+00 : f32
    %168 = vector.broadcast %cst_68 : f32 to vector<16x64xf32>
    %169 = arith.maximumf %167, %168 : vector<16x64xf32>
    %c0_69 = arith.constant 0 : index
    %c0_70 = arith.constant 0 : index
    %170 = vector.load %arg5[%c0_69, %c0_70] : memref<64x32xf32, #tpu.memory_space<vmem>>, vector<64x32xf32>
    %cst_71 = arith.constant dense<0.000000e+00> : vector<16x32xf32>
    %171 = tpu.matmul %169, %170, %cst_71 {dimension_numbers = #tpu.dot_dimension_numbers<[1], [0], [0], [1], [0, 0, 1, 1], [], []>} : vector<16x64xf32>, vector<64x32xf32>, vector<16x32xf32> -> vector<16x32xf32>
    %172 = vector.broadcast %6 : vector<1x32xf32> to vector<16x32xf32>
    %173 = arith.addf %171, %172 : vector<16x32xf32>
    %174 = arith.addf %173, %163 : vector<16x32xf32>
    %cst_72 = arith.constant dense<0.000000e+00> : vector<16xf32>
    %175 = vector.multi_reduction <add>, %174, %cst_72 [1] : vector<16x32xf32> to vector<16xf32>
    %176 = vector.shape_cast %175 : vector<16xf32> to vector<16x1xf32>
    %cst_73 = arith.constant 3.200000e+01 : f32
    %177 = vector.broadcast %cst_73 : f32 to vector<16x1xf32>
    %178 = arith.divf %176, %177 : vector<16x1xf32>
    %179 = vector.broadcast %178 : vector<16x1xf32> to vector<16x32xf32>
    %180 = arith.subf %174, %179 : vector<16x32xf32>
    %181 = arith.mulf %180, %180 : vector<16x32xf32>
    %cst_74 = arith.constant dense<0.000000e+00> : vector<16xf32>
    %182 = vector.multi_reduction <add>, %181, %cst_74 [1] : vector<16x32xf32> to vector<16xf32>
    %183 = vector.shape_cast %182 : vector<16xf32> to vector<16x1xf32>
    %cst_75 = arith.constant 3.200000e+01 : f32
    %184 = vector.broadcast %cst_75 : f32 to vector<16x1xf32>
    %185 = arith.divf %183, %184 : vector<16x1xf32>
    %186 = vector.broadcast %178 : vector<16x1xf32> to vector<16x32xf32>
    %187 = arith.subf %174, %186 : vector<16x32xf32>
    %cst_76 = arith.constant 9.99999997E-7 : f32
    %188 = vector.broadcast %cst_76 : f32 to vector<16x1xf32>
    %189 = arith.addf %185, %188 : vector<16x1xf32>
    %190 = math.rsqrt %189 : vector<16x1xf32>
    %191 = vector.broadcast %190 : vector<16x1xf32> to vector<16x32xf32>
    %192 = arith.mulf %187, %191 : vector<16x32xf32>
    %193 = vector.broadcast %11 : vector<1x32xf32> to vector<16x32xf32>
    %194 = arith.mulf %192, %193 : vector<16x32xf32>
    %195 = vector.broadcast %12 : vector<1x32xf32> to vector<16x32xf32>
    %196 = arith.addf %194, %195 : vector<16x32xf32>
    %197 = arith.addf %196, %163 : vector<16x32xf32>
    %cst_77 = arith.constant dense<0.000000e+00> : vector<16xf32>
    %198 = vector.multi_reduction <add>, %197, %cst_77 [1] : vector<16x32xf32> to vector<16xf32>
    %199 = vector.shape_cast %198 : vector<16xf32> to vector<16x1xf32>
    %cst_78 = arith.constant 3.200000e+01 : f32
    %200 = vector.broadcast %cst_78 : f32 to vector<16x1xf32>
    %201 = arith.divf %199, %200 : vector<16x1xf32>
    %202 = vector.broadcast %201 : vector<16x1xf32> to vector<16x32xf32>
    %203 = arith.subf %197, %202 : vector<16x32xf32>
    %204 = arith.mulf %203, %203 : vector<16x32xf32>
    %cst_79 = arith.constant dense<0.000000e+00> : vector<16xf32>
    %205 = vector.multi_reduction <add>, %204, %cst_79 [1] : vector<16x32xf32> to vector<16xf32>
    %206 = vector.shape_cast %205 : vector<16xf32> to vector<16x1xf32>
    %cst_80 = arith.constant 3.200000e+01 : f32
    %207 = vector.broadcast %cst_80 : f32 to vector<16x1xf32>
    %208 = arith.divf %206, %207 : vector<16x1xf32>
    %209 = vector.broadcast %201 : vector<16x1xf32> to vector<16x32xf32>
    %210 = arith.subf %197, %209 : vector<16x32xf32>
    %cst_81 = arith.constant 9.99999997E-7 : f32
    %211 = vector.broadcast %cst_81 : f32 to vector<16x1xf32>
    %212 = arith.addf %208, %211 : vector<16x1xf32>
    %213 = math.rsqrt %212 : vector<16x1xf32>
    %214 = vector.broadcast %213 : vector<16x1xf32> to vector<16x32xf32>
    %215 = arith.mulf %210, %214 : vector<16x32xf32>
    %216 = vector.broadcast %9 : vector<1x32xf32> to vector<16x32xf32>
    %217 = arith.mulf %215, %216 : vector<16x32xf32>
    %218 = vector.broadcast %10 : vector<1x32xf32> to vector<16x32xf32>
    %219 = arith.addf %217, %218 : vector<16x32xf32>
    %c0_82 = arith.constant 0 : index
    %c0_83 = arith.constant 0 : index
    %220 = vector.load %arg7[%c0_82, %c0_83] : memref<16x32xf32, #tpu.memory_space<vmem>>, vector<16x32xf32>
    tpu.vector_store %arg7[%c0_82, %c0_83], %219 {strides = array<i32>} : memref<16x32xf32, #tpu.memory_space<vmem>>, vector<16x32xf32>,
    return
  }
}

</mosaic_0001>

<llo_original>
// kernel: fwd.1
$region0: #{fwd.1}
  #allocation0 [shape = 'u32[]', space=smem, size = 0x4, offset = 0x4, fixed_abs, tag = 'smem constant byte address 0x4 - core index']
  #allocation1 [shape = 'u32[144,128]{1,0:T(1,128)}', space=vmem, size = 0x12000, scoped, tag = 'internal scratch']
  %s0 = inlined_call_operand.vmem [shape: f32[16,32], index: 0, kind: input, shape index: {}]
  %s1 = inlined_call_operand.vmem [shape: f32[16,16], index: 1, kind: input, shape index: {}]
  %s2 = inlined_call_operand.vmem [shape: f32[32,96], index: 2, kind: input, shape index: {}]
  %s3 = inlined_call_operand.vmem [shape: f32[32,32], index: 3, kind: input, shape index: {}]
  %s4 = inlined_call_operand.vmem [shape: f32[32,64], index: 4, kind: input, shape index: {}]
  %s5 = inlined_call_operand.vmem [shape: f32[64,32], index: 5, kind: input, shape index: {}]
  %s6 = inlined_call_operand.vmem [shape: f32[10,96], index: 6, kind: input, shape index: {}]
  %s7 = inlined_call_operand.hbm [shape: f32[16,32], index: 7, kind: output, shape index: {0}]
  %s8 = inlined_call_operand.hbm [shape: f32[2,4,8,8], index: 8, kind: output, shape index: {1}]
  %9 = xla_tuple %s7, %s8
  %s10 = sld [smem:[#allocation0]]
  $region46: #{fwd.1} parent=0
    _
  %s12 = ssub.s32 1, %s10
  %s13 = scalar_select 0, %s12, %s10
  $region1: #{fwd.1} parent=0
    #allocation2 [shape = 'u8[8192]{0}', space=vmem, size = 0x2000, scoped, tag = 'output window, operand 0, single buffered']
    #allocation3 [shape = 's32[1]{0}', space=sflag, size = 0x4, scoped, tag = 'scoped memory for fwd.1']
    #allocation4 [shape = 'u8[32768]{0}', space=vmem, size = 0x8000, scoped, tag = 'output window, operand 1, single buffered']
    #allocation5 [shape = 's32[1]{0}', space=sflag, size = 0x4, scoped, tag = 'scoped memory for fwd.1']
    %14 = vsyncpa [#allocation3], 0
    %15 = vsyncpa [#allocation5], 0
    // Predicated region
    $region2: #{fwd.1} parent=1 // pred_check
      _
    $region3: #{fwd.1} parent=1 // pred_check_branch
      %17 = sbr.rel (0) target = $region5
    $region4: #{fwd.1} parent=1 // pred_region
      _
    $region5: #{fwd.1} parent=1 // pred_fallthru
      _
    // Predicated region
    $region6: #{fwd.1} parent=1 // pred_check
      _
    $region7: #{fwd.1} parent=1 // pred_check_branch
      %19 = sbr.rel (0) target = $region9
    $region8: #{fwd.1} parent=1 // pred_region
      _
    $region9: #{fwd.1} parent=1 // pred_fallthru
      _
    // Predicated region
    $region10: #{fwd.1} parent=1 // pred_check
      _
    $region11: #{fwd.1} parent=1 // pred_check_branch
      %21 = sbr.rel (0) target = $region13
    $region12: #{fwd.1} parent=1 // pred_region
      _
    $region13: #{fwd.1} parent=1 // pred_fallthru
      _
    // Predicated region
    $region14: #{fwd.1} parent=1 // pred_check
      _
    $region15: #{fwd.1} parent=1 // pred_check_branch
      %23 = sbr.rel (0) target = $region17
    $region16: #{fwd.1} parent=1 // pred_region
      _
    $region17: #{fwd.1} parent=1 // pred_fallthru
      _
    // Predicated region
    $region18: #{fwd.1} parent=1 // pred_check
      _
    $region19: #{fwd.1} parent=1 // pred_check_branch
      %25 = sbr.rel (0) target = $region21
    $region20: #{fwd.1} parent=1 // pred_region
      _
    $region21: #{fwd.1} parent=1 // pred_fallthru
      _
    // Predicated region
    $region22: #{fwd.1} parent=1 // pred_check
      _
    $region23: #{fwd.1} parent=1 // pred_check_branch
      %27 = sbr.rel (0) target = $region25
    $region24: #{fwd.1} parent=1 // pred_region
      _
    $region25: #{fwd.1} parent=1 // pred_fallthru
      _
    // Predicated region
    $region26: #{fwd.1} parent=1 // pred_check
      _
    $region27: #{fwd.1} parent=1 // pred_check_branch
      %29 = sbr.rel (0) target = $region29
    $region28: #{fwd.1} parent=1 // pred_region
      _
    $region29: #{fwd.1} parent=1 // pred_fallthru
      _
    %v30 = vld [vmem:[%s0] sm:$0xff]
    %v31 = vld [vmem:[%s0 + $0x8] sm:$0xff]
    %v32 = vld [vmem:[%s1] sm:$0xff]
    %v33 = vld [vmem:[%s1 + $0x8] sm:$0xff]
    %v34 = vld [vmem:[%s6] sm:$0xff]
    %v35 = vld [vmem:[%s6 + $0x8] sm:$0x3]
    %v36 = vld [vmem:[%s2] sm:$0xff]
    %v37 = vld [vmem:[%s2 + $0x8] sm:$0xff]
    %v38 = vld [vmem:[%s2 + $0x10] sm:$0xff]
    %v39 = vld [vmem:[%s2 + $0x18] sm:$0xff]
    %v40 = vlaneseq
    %v41 = vshrl.u32 %v40, 7
    %v42 = vsub.s32 0, %v41
    %v43 = vrot.slane %v34, %v42
    %vm44 = vcmask 261120
    %v46 = vsel %vm44, %v30, 0
    %v49 = vsel %vm44, %v31, 0
    %51 = vmatprep.subr.mxu0 0.0
    %52 = vmatpush1.msra.mxu0 0.0
    %53 = vmatprep.subr.mxu0 0.0
    %54 = vmatpush1.msra.mxu0 0.0
    %55 = vmatprep.subr.mxu0 0.0
    %56 = vmatpush1.msra.mxu0 0.0
    %57 = vmatprep.subr.mxu0 0.0
    %58 = vmatpush1.msra.mxu0 0.0
    %59 = vmatprep.subr.mxu0 0.0
    %60 = vmatpush1.msra.mxu0 0.0
    %61 = vmatprep.subr.mxu0 0.0
    %62 = vmatpush1.msra.mxu0 0.0
    %63 = vmatprep.subr.mxu0 0.0
    %64 = vmatpush1.msra.mxu0 0.0
    %65 = vmatprep.subr.mxu0 0.0
    %66 = vmatpush1.msra.mxu0 0.0
    %67 = vmatprep.subr.mxu0 0.0
    %68 = vmatpush1.msra.mxu0 0.0
    %69 = vmatprep.subr.mxu0 0.0
    %70 = vmatpush1.msra.mxu0 0.0
    %71 = vmatprep.subr.mxu0 0.0
    %72 = vmatpush1.msra.mxu0 0.0
    %73 = vmatprep.subr.mxu0 0.0
    %74 = vmatpush1.msra.mxu0 0.0
    %75 = vmatprep.subr.mxu0 0.0
    %76 = vmatpush1.msra.mxu0 %v39
    %77 = vmatprep.subr.mxu0 0.0
    %78 = vmatpush1.msra.mxu0 %v38
    %79 = vmatprep.subr.mxu0 0.0
    %80 = vmatpush1.msra.mxu0 %v37
    %81 = vmatprep.subr.mxu0 0.0
    %82 = vmatpush1.msra.mxu0 %v36
    %83 = vmatprep.subr.mxu0 0.0
    %84 = vmatpush2.msra.mxu0 0.0
    %85 = vmatprep.subr.mxu0 0.0
    %86 = vmatpush2.msra.mxu0 0.0
    %87 = vmatprep.subr.mxu0 0.0
    %88 = vmatpush2.msra.mxu0 0.0
    %89 = vmatprep.subr.mxu0 0.0
    %90 = vmatpush2.msra.mxu0 0.0
    %91 = vmatprep.subr.mxu0 0.0
    %92 = vmatpush2.msra.mxu0 0.0
    %93 = vmatprep.subr.mxu0 0.0
    %94 = vmatpush2.msra.mxu0 0.0
    %95 = vmatprep.subr.mxu0 0.0
    %96 = vmatpush2.msra.mxu0 0.0
    %97 = vmatprep.subr.mxu0 0.0
    %98 = vmatpush2.msra.mxu0 0.0
    %99 = vmatprep.subr.mxu0 0.0
    %100 = vmatpush2.msra.mxu0 0.0
    %101 = vmatprep.subr.mxu0 0.0
    %102 = vmatpush2.msra.mxu0 0.0
    %103 = vmatprep.subr.mxu0 0.0
    %104 = vmatpush2.msra.mxu0 0.0
    %105 = vmatprep.subr.mxu0 0.0
    %106 = vmatpush2.msra.mxu0 0.0
    %107 = vmatprep.subr.mxu0 0.0
    %108 = vmatpush2.msra.mxu0 0.0
    %109 = vmatprep.subr.mxu0 0.0
    %110 = vmatpush2.msra.mxu0 0.0
    %111 = vmatprep.subr.mxu0 0.0
    %112 = vmatpush2.msra.mxu0 0.0
    %113 = vmatprep.subr.mxu0 0.0
    %114 = vmatpush2.msra.mxu0 0.0
    %115 = vmatprep.mubr.f32.mxu0 0.0
    %116 = vmatmul.mubr.f32.gmra.mxu0 %v46
    %v117 = vpop.f32.mrf.mxu0
    %v118 = vadd.f32 %v43, %v117
    %v119 = vpop.f32.mrf.mxu0
    %120 = vmatprep.mubr.f32.mxu0 0.0
    %121 = vmatmul.mubr.f32.gmra.mxu0 %v49
    %v122 = vpop.f32.mrf.mxu0
    %v123 = vadd.f32 %v43, %v122
    %v124 = vpop.f32.mrf.mxu0
    %125 = vdwg.mxu0
    %128 = vrot.lane.b32.xlu0 %v118, 96
    %v129 = vpop.permute.xlu0 %128
    %130 = vrot.lane.b32.xlu0 %v123, 96
    %v131 = vpop.permute.xlu0 %130
    %vm132 = vcmask 64512
    %v133 = vsel %vm132, %v118, 0
    %v135 = vsel %vm132, %v123, 0
    %v137 = vsel %vm132, %v129, 0
    %v139 = vsel %vm132, %v131, 0
    %141 = vmatprep.subr.mxu0 0.0
    %142 = vmatpush1.xpose.msra.mxu0 0.0
    %143 = vmatprep.subr.mxu0 0.0
    %144 = vmatpush1.xpose.msra.mxu0 0.0
    %145 = vmatprep.subr.mxu0 0.0
    %146 = vmatpush1.xpose.msra.mxu0 0.0
    %147 = vmatprep.subr.mxu0 0.0
    %148 = vmatpush1.xpose.msra.mxu0 0.0
    %149 = vmatprep.subr.mxu0 0.0
    %150 = vmatpush1.xpose.msra.mxu0 0.0
    %151 = vmatprep.subr.mxu0 0.0
    %152 = vmatpush1.xpose.msra.mxu0 0.0
    %153 = vmatprep.subr.mxu0 0.0
    %154 = vmatpush1.xpose.msra.mxu0 0.0
    %155 = vmatprep.subr.mxu0 0.0
    %156 = vmatpush1.xpose.msra.mxu0 0.0
    %157 = vmatprep.subr.mxu0 0.0
    %158 = vmatpush1.xpose.msra.mxu0 0.0
    %159 = vmatprep.subr.mxu0 0.0
    %160 = vmatpush1.xpose.msra.mxu0 0.0
    %161 = vmatprep.subr.mxu0 0.0
    %162 = vmatpush1.xpose.msra.mxu0 0.0
    %163 = vmatprep.subr.mxu0 0.0
    %164 = vmatpush1.xpose.msra.mxu0 0.0
    %165 = vmatprep.subr.mxu0 0.0
    %166 = vmatpush1.xpose.msra.mxu0 0.0
    %167 = vmatprep.subr.mxu0 0.0
    %168 = vmatpush1.xpose.msra.mxu0 0.0
    %169 = vmatprep.subr.mxu0 0.0
    %170 = vmatpush1.xpose.msra.mxu0 %v139
    %171 = vmatprep.subr.mxu0 0.0
    %172 = vmatpush1.xpose.msra.mxu0 %v137
    %173 = vmatprep.subr.mxu0 0.0
    %174 = vmatpush2.xpose.msra.mxu0 0.0
    %175 = vmatprep.subr.mxu0 0.0
    %176 = vmatpush2.xpose.msra.mxu0 0.0
    %177 = vmatprep.subr.mxu0 0.0
    %178 = vmatpush2.xpose.msra.mxu0 0.0
    %179 = vmatprep.subr.mxu0 0.0
    %180 = vmatpush2.xpose.msra.mxu0 0.0
    %181 = vmatprep.subr.mxu0 0.0
    %182 = vmatpush2.xpose.msra.mxu0 0.0
    %183 = vmatprep.subr.mxu0 0.0
    %184 = vmatpush2.xpose.msra.mxu0 0.0
    %185 = vmatprep.subr.mxu0 0.0
    %186 = vmatpush2.xpose.msra.mxu0 0.0
    %187 = vmatprep.subr.mxu0 0.0
    %188 = vmatpush2.xpose.msra.mxu0 0.0
    %189 = vmatprep.subr.mxu0 0.0
    %190 = vmatpush2.xpose.msra.mxu0 0.0
    %191 = vmatprep.subr.mxu0 0.0
    %192 = vmatpush2.xpose.msra.mxu0 0.0
    %193 = vmatprep.subr.mxu0 0.0
    %194 = vmatpush2.xpose.msra.mxu0 0.0
    %195 = vmatprep.subr.mxu0 0.0
    %196 = vmatpush2.xpose.msra.mxu0 0.0
    %197 = vmatprep.subr.mxu0 0.0
    %198 = vmatpush2.xpose.msra.mxu0 0.0
    %199 = vmatprep.subr.mxu0 0.0
    %200 = vmatpush2.xpose.msra.mxu0 0.0
    %201 = vmatprep.subr.mxu0 0.0
    %202 = vmatpush2.xpose.msra.mxu0 0.0
    %203 = vmatprep.subr.mxu0 0.0
    %204 = vmatpush2.xpose.msra.mxu0 0.0
    %205 = vmatprep.mubr.f32.mxu0 0.0
    %206 = vmatmul.mubr.f32.gmra.mxu0 %v133
    %v207 = vpop.f32.mrf.mxu0
    %v208 = vadd.f32 %v32, %v207
    %v209 = vpop.f32.mrf.mxu0
    %210 = vmatprep.mubr.f32.mxu0 0.0
    %211 = vmatmul.mubr.f32.gmra.mxu0 %v135
    %v212 = vpop.f32.mrf.mxu0
    %v213 = vadd.f32 %v33, %v212
    %v214 = vpop.f32.mrf.mxu0
    %215 = vdwg.mxu0
    %vm216 = vcmask 130048
    %v217 = vsel %vm216, %v208, -inf
    %218 = vmax.xlane.f32.xlu0 %v217
    %v219 = vpop.xlane.xlu0 %218
    %v220 = vsel %vm216, %v213, -inf
    %221 = vmax.xlane.f32.xlu0 %v220
    %v222 = vpop.xlane.xlu0 %221
    %v223 = vsub.f32 %v208, %v219
    %v224 = vsub.f32 %v213, %v222
    %v225 = vmul.f32 %v223, 1.442695
    %v226 = vpow.pop %v225
    %v227 = vmul.f32 %v224, 1.442695
    %v228 = vpow.pop %v227
    %v229 = vsel %vm216, %v226, 0.0
    %230 = vadd.xlane.f32.xlu0 %v229
    %v231 = vpop.xlane.xlu0 %230
    %v232 = vsel %vm216, %v228, 0.0
    %233 = vadd.xlane.f32.xlu0 %v232
    %v234 = vpop.xlane.xlu0 %233
    %v235 = vrcp.pop %v231
    %v236 = vrcp.pop %v234
    %v237 = vmul.f32 %v226, %v235
    %v238 = vmul.f32 %v228, %v236
    %239 = vst.msk [vmem:[#allocation4] sm:$0xff] %vm132, %v237
    %241 = vrot.lane.b32.xlu0 %v238, 120
    %v242 = vpop.permute.xlu0 %241
    %s244 = scalar_lea.vmem [#allocation4], 32
    %245 = vst.msk [vmem:[%s244] sm:$0xff] %vm132, %v242
    %246 = vrot.lane.b32.xlu0 %v118, 64
    %v247 = vpop.permute.xlu0 %246
    %248 = vrot.lane.b32.xlu0 %v123, 64
    %v249 = vpop.permute.xlu0 %248
    %v253 = vsel %vm216, %v237, 0
    %v255 = vsel %vm216, %v238, 0
    %257 = vmatprep.subr.mxu0 0.0
    %258 = vmatpush1.msra.mxu0 0.0
    %259 = vmatprep.subr.mxu0 0.0
    %260 = vmatpush1.msra.mxu0 0.0
    %261 = vmatprep.subr.mxu0 0.0
    %262 = vmatpush1.msra.mxu0 0.0
    %263 = vmatprep.subr.mxu0 0.0
    %264 = vmatpush1.msra.mxu0 0.0
    %265 = vmatprep.subr.mxu0 0.0
    %266 = vmatpush1.msra.mxu0 0.0
    %267 = vmatprep.subr.mxu0 0.0
    %268 = vmatpush1.msra.mxu0 0.0
    %269 = vmatprep.subr.mxu0 0.0
    %270 = vmatpush1.msra.mxu0 0.0
    %271 = vmatprep.subr.mxu0 0.0
    %272 = vmatpush1.msra.mxu0 0.0
    %273 = vmatprep.subr.mxu0 0.0
    %274 = vmatpush1.msra.mxu0 0.0
    %275 = vmatprep.subr.mxu0 0.0
    %276 = vmatpush1.msra.mxu0 0.0
    %277 = vmatprep.subr.mxu0 0.0
    %278 = vmatpush1.msra.mxu0 0.0
    %279 = vmatprep.subr.mxu0 0.0
    %280 = vmatpush1.msra.mxu0 0.0
    %281 = vmatprep.subr.mxu0 0.0
    %282 = vmatpush1.msra.mxu0 0.0
    %283 = vmatprep.subr.mxu0 0.0
    %284 = vmatpush1.msra.mxu0 0.0
    %285 = vmatprep.subr.mxu0 0.0
    %286 = vmatpush1.msra.mxu0 %v249
    %287 = vmatprep.subr.mxu0 0.0
    %288 = vmatpush1.msra.mxu0 %v247
    %289 = vmatprep.subr.mxu0 0.0
    %290 = vmatpush2.msra.mxu0 0.0
    %291 = vmatprep.subr.mxu0 0.0
    %292 = vmatpush2.msra.mxu0 0.0
    %293 = vmatprep.subr.mxu0 0.0
    %294 = vmatpush2.msra.mxu0 0.0
    %295 = vmatprep.subr.mxu0 0.0
    %296 = vmatpush2.msra.mxu0 0.0
    %297 = vmatprep.subr.mxu0 0.0
    %298 = vmatpush2.msra.mxu0 0.0
    %299 = vmatprep.subr.mxu0 0.0
    %300 = vmatpush2.msra.mxu0 0.0
    %301 = vmatprep.subr.mxu0 0.0
    %302 = vmatpush2.msra.mxu0 0.0
    %303 = vmatprep.subr.mxu0 0.0
    %304 = vmatpush2.msra.mxu0 0.0
    %305 = vmatprep.subr.mxu0 0.0
    %306 = vmatpush2.msra.mxu0 0.0
    %307 = vmatprep.subr.mxu0 0.0
    %308 = vmatpush2.msra.mxu0 0.0
    %309 = vmatprep.subr.mxu0 0.0
    %310 = vmatpush2.msra.mxu0 0.0
    %311 = vmatprep.subr.mxu0 0.0
    %312 = vmatpush2.msra.mxu0 0.0
    %313 = vmatprep.subr.mxu0 0.0
    %314 = vmatpush2.msra.mxu0 0.0
    %315 = vmatprep.subr.mxu0 0.0
    %316 = vmatpush2.msra.mxu0 0.0
    %317 = vmatprep.subr.mxu0 0.0
    %318 = vmatpush2.msra.mxu0 0.0
    %319 = vmatprep.subr.mxu0 0.0
    %320 = vmatpush2.msra.mxu0 0.0
    %321 = vmatprep.mubr.f32.mxu0 0.0
    %322 = vmatmul.mubr.f32.gmra.mxu0 %v253
    %v323 = vpop.f32.mrf.mxu0
    %v324 = vadd.f32 0.0, %v323
    %v325 = vpop.f32.mrf.mxu0
    %326 = vmatprep.mubr.f32.mxu0 0.0
    %327 = vmatmul.mubr.f32.gmra.mxu0 %v255
    %v328 = vpop.f32.mrf.mxu0
    %v329 = vadd.f32 0.0, %v328
    %v330 = vpop.f32.mrf.mxu0
    %331 = vdwg.mxu0
    %332 = vrot.lane.b32.xlu0 %v118, 120
    %v333 = vpop.permute.xlu0 %332
    %334 = vrot.lane.b32.xlu0 %v123, 120
    %v335 = vpop.permute.xlu0 %334
    %336 = vrot.lane.b32.xlu0 %v118, 88
    %v337 = vpop.permute.xlu0 %336
    %338 = vrot.lane.b32.xlu0 %v123, 88
    %v339 = vpop.permute.xlu0 %338
    %v340 = vsel %vm132, %v333, 0
    %v342 = vsel %vm132, %v335, 0
    %v344 = vsel %vm132, %v337, 0
    %v346 = vsel %vm132, %v339, 0
    %348 = vmatprep.subr.mxu0 0.0
    %349 = vmatpush1.xpose.msra.mxu0 0.0
    %350 = vmatprep.subr.mxu0 0.0
    %351 = vmatpush1.xpose.msra.mxu0 0.0
    %352 = vmatprep.subr.mxu0 0.0
    %353 = vmatpush1.xpose.msra.mxu0 0.0
    %354 = vmatprep.subr.mxu0 0.0
    %355 = vmatpush1.xpose.msra.mxu0 0.0
    %356 = vmatprep.subr.mxu0 0.0
    %357 = vmatpush1.xpose.msra.mxu0 0.0
    %358 = vmatprep.subr.mxu0 0.0
    %359 = vmatpush1.xpose.msra.mxu0 0.0
    %360 = vmatprep.subr.mxu0 0.0
    %361 = vmatpush1.xpose.msra.mxu0 0.0
    %362 = vmatprep.subr.mxu0 0.0
    %363 = vmatpush1.xpose.msra.mxu0 0.0
    %364 = vmatprep.subr.mxu0 0.0
    %365 = vmatpush1.xpose.msra.mxu0 0.0
    %366 = vmatprep.subr.mxu0 0.0
    %367 = vmatpush1.xpose.msra.mxu0 0.0
    %368 = vmatprep.subr.mxu0 0.0
    %369 = vmatpush1.xpose.msra.mxu0 0.0
    %370 = vmatprep.subr.mxu0 0.0
    %371 = vmatpush1.xpose.msra.mxu0 0.0
    %372 = vmatprep.subr.mxu0 0.0
    %373 = vmatpush1.xpose.msra.mxu0 0.0
    %374 = vmatprep.subr.mxu0 0.0
    %375 = vmatpush1.xpose.msra.mxu0 0.0
    %376 = vmatprep.subr.mxu0 0.0
    %377 = vmatpush1.xpose.msra.mxu0 %v346
    %378 = vmatprep.subr.mxu0 0.0
    %379 = vmatpush1.xpose.msra.mxu0 %v344
    %380 = vmatprep.subr.mxu0 0.0
    %381 = vmatpush2.xpose.msra.mxu0 0.0
    %382 = vmatprep.subr.mxu0 0.0
    %383 = vmatpush2.xpose.msra.mxu0 0.0
    %384 = vmatprep.subr.mxu0 0.0
    %385 = vmatpush2.xpose.msra.mxu0 0.0
    %386 = vmatprep.subr.mxu0 0.0
    %387 = vmatpush2.xpose.msra.mxu0 0.0
    %388 = vmatprep.subr.mxu0 0.0
    %389 = vmatpush2.xpose.msra.mxu0 0.0
    %390 = vmatprep.subr.mxu0 0.0
    %391 = vmatpush2.xpose.msra.mxu0 0.0
    %392 = vmatprep.subr.mxu0 0.0
    %393 = vmatpush2.xpose.msra.mxu0 0.0
    %394 = vmatprep.subr.mxu0 0.0
    %395 = vmatpush2.xpose.msra.mxu0 0.0
    %396 = vmatprep.subr.mxu0 0.0
    %397 = vmatpush2.xpose.msra.mxu0 0.0
    %398 = vmatprep.subr.mxu0 0.0
    %399 = vmatpush2.xpose.msra.mxu0 0.0
    %400 = vmatprep.subr.mxu0 0.0
    %401 = vmatpush2.xpose.msra.mxu0 0.0
    %402 = vmatprep.subr.mxu0 0.0
    %403 = vmatpush2.xpose.msra.mxu0 0.0
    %404 = vmatprep.subr.mxu0 0.0
    %405 = vmatpush2.xpose.msra.mxu0 0.0
    %406 = vmatprep.subr.mxu0 0.0
    %407 = vmatpush2.xpose.msra.mxu0 0.0
    %408 = vmatprep.subr.mxu0 0.0
    %409 = vmatpush2.xpose.msra.mxu0 0.0
    %410 = vmatprep.subr.mxu0 0.0
    %411 = vmatpush2.xpose.msra.mxu0 0.0
    %412 = vmatprep.mubr.f32.mxu0 0.0
    %413 = vmatmul.mubr.f32.gmra.mxu0 %v340
    %v414 = vpop.f32.mrf.mxu0
    %v415 = vadd.f32 %v32, %v414
    %v416 = vpop.f32.mrf.mxu0
    %417 = vmatprep.mubr.f32.mxu0 0.0
    %418 = vmatmul.mubr.f32.gmra.mxu0 %v342
    %v419 = vpop.f32.mrf.mxu0
    %v420 = vadd.f32 %v33, %v419
    %v421 = vpop.f32.mrf.mxu0
    %422 = vdwg.mxu0
    %v423 = vsel %vm216, %v415, -inf
    %424 = vmax.xlane.f32.xlu0 %v423
    %v425 = vpop.xlane.xlu0 %424
    %v426 = vsel %vm216, %v420, -inf
    %427 = vmax.xlane.f32.xlu0 %v426
    %v428 = vpop.xlane.xlu0 %427
    %v429 = vsub.f32 %v415, %v425
    %v430 = vsub.f32 %v420, %v428
    %v431 = vmul.f32 %v429, 1.442695
    %v432 = vpow.pop %v431
    %v433 = vmul.f32 %v430, 1.442695
    %v434 = vpow.pop %v433
    %v435 = vsel %vm216, %v432, 0.0
    %436 = vadd.xlane.f32.xlu0 %v435
    %v437 = vpop.xlane.xlu0 %436
    %v438 = vsel %vm216, %v434, 0.0
    %439 = vadd.xlane.f32.xlu0 %v438
    %v440 = vpop.xlane.xlu0 %439
    %v441 = vrcp.pop %v437
    %v442 = vrcp.pop %v440
    %v443 = vmul.f32 %v432, %v441
    %v444 = vmul.f32 %v434, %v442
    %s445 = scalar_lea.vmem [#allocation4], 8
    %446 = vst.msk [vmem:[%s445] sm:$0xff] %vm132, %v443
    %448 = vrot.lane.b32.xlu0 %v444, 120
    %v449 = vpop.permute.xlu0 %448
    %s451 = scalar_lea.vmem [#allocation4], 40
    %452 = vst.msk [vmem:[%s451] sm:$0xff] %vm132, %v449
    %453 = vrot.lane.b32.xlu0 %v118, 56
    %v454 = vpop.permute.xlu0 %453
    %455 = vrot.lane.b32.xlu0 %v123, 56
    %v456 = vpop.permute.xlu0 %455
    %v460 = vsel %vm216, %v443, 0
    %v462 = vsel %vm216, %v444, 0
    %464 = vmatprep.subr.mxu0 0.0
    %465 = vmatpush1.msra.mxu0 0.0
    %466 = vmatprep.subr.mxu0 0.0
    %467 = vmatpush1.msra.mxu0 0.0
    %468 = vmatprep.subr.mxu0 0.0
    %469 = vmatpush1.msra.mxu0 0.0
    %470 = vmatprep.subr.mxu0 0.0
    %471 = vmatpush1.msra.mxu0 0.0
    %472 = vmatprep.subr.mxu0 0.0
    %473 = vmatpush1.msra.mxu0 0.0
    %474 = vmatprep.subr.mxu0 0.0
    %475 = vmatpush1.msra.mxu0 0.0
    %476 = vmatprep.subr.mxu0 0.0
    %477 = vmatpush1.msra.mxu0 0.0
    %478 = vmatprep.subr.mxu0 0.0
    %479 = vmatpush1.msra.mxu0 0.0
    %480 = vmatprep.subr.mxu0 0.0
    %481 = vmatpush1.msra.mxu0 0.0
    %482 = vmatprep.subr.mxu0 0.0
    %483 = vmatpush1.msra.mxu0 0.0
    %484 = vmatprep.subr.mxu0 0.0
    %485 = vmatpush1.msra.mxu0 0.0
    %486 = vmatprep.subr.mxu0 0.0
    %487 = vmatpush1.msra.mxu0 0.0
    %488 = vmatprep.subr.mxu0 0.0
    %489 = vmatpush1.msra.mxu0 0.0
    %490 = vmatprep.subr.mxu0 0.0
    %491 = vmatpush1.msra.mxu0 0.0
    %492 = vmatprep.subr.mxu0 0.0
    %493 = vmatpush1.msra.mxu0 %v456
    %494 = vmatprep.subr.mxu0 0.0
    %495 = vmatpush1.msra.mxu0 %v454
    %496 = vmatprep.subr.mxu0 0.0
    %497 = vmatpush2.msra.mxu0 0.0
    %498 = vmatprep.subr.mxu0 0.0
    %499 = vmatpush2.msra.mxu0 0.0
    %500 = vmatprep.subr.mxu0 0.0
    %501 = vmatpush2.msra.mxu0 0.0
    %502 = vmatprep.subr.mxu0 0.0
    %503 = vmatpush2.msra.mxu0 0.0
    %504 = vmatprep.subr.mxu0 0.0
    %505 = vmatpush2.msra.mxu0 0.0
    %506 = vmatprep.subr.mxu0 0.0
    %507 = vmatpush2.msra.mxu0 0.0
    %508 = vmatprep.subr.mxu0 0.0
    %509 = vmatpush2.msra.mxu0 0.0
    %510 = vmatprep.subr.mxu0 0.0
    %511 = vmatpush2.msra.mxu0 0.0
    %512 = vmatprep.subr.mxu0 0.0
    %513 = vmatpush2.msra.mxu0 0.0
    %514 = vmatprep.subr.mxu0 0.0
    %515 = vmatpush2.msra.mxu0 0.0
    %516 = vmatprep.subr.mxu0 0.0
    %517 = vmatpush2.msra.mxu0 0.0
    %518 = vmatprep.subr.mxu0 0.0
    %519 = vmatpush2.msra.mxu0 0.0
    %520 = vmatprep.subr.mxu0 0.0
    %521 = vmatpush2.msra.mxu0 0.0
    %522 = vmatprep.subr.mxu0 0.0
    %523 = vmatpush2.msra.mxu0 0.0
    %524 = vmatprep.subr.mxu0 0.0
    %525 = vmatpush2.msra.mxu0 0.0
    %526 = vmatprep.subr.mxu0 0.0
    %527 = vmatpush2.msra.mxu0 0.0
    %528 = vmatprep.mubr.f32.mxu0 0.0
    %529 = vmatmul.mubr.f32.gmra.mxu0 %v460
    %v530 = vpop.f32.mrf.mxu0
    %v531 = vadd.f32 0.0, %v530
    %v532 = vpop.f32.mrf.mxu0
    %533 = vmatprep.mubr.f32.mxu0 0.0
    %534 = vmatmul.mubr.f32.gmra.mxu0 %v462
    %v535 = vpop.f32.mrf.mxu0
    %v536 = vadd.f32 0.0, %v535
    %v537 = vpop.f32.mrf.mxu0
    %538 = vdwg.mxu0
    %539 = vrot.lane.b32.xlu0 %v118, 112
    %v540 = vpop.permute.xlu0 %539
    %541 = vrot.lane.b32.xlu0 %v123, 112
    %v542 = vpop.permute.xlu0 %541
    %543 = vrot.lane.b32.xlu0 %v118, 80
    %v544 = vpop.permute.xlu0 %543
    %545 = vrot.lane.b32.xlu0 %v123, 80
    %v546 = vpop.permute.xlu0 %545
    %v547 = vsel %vm132, %v540, 0
    %v549 = vsel %vm132, %v542, 0
    %v551 = vsel %vm132, %v544, 0
    %v553 = vsel %vm132, %v546, 0
    %555 = vmatprep.subr.mxu0 0.0
    %556 = vmatpush1.xpose.msra.mxu0 0.0
    %557 = vmatprep.subr.mxu0 0.0
    %558 = vmatpush1.xpose.msra.mxu0 0.0
    %559 = vmatprep.subr.mxu0 0.0
    %560 = vmatpush1.xpose.msra.mxu0 0.0
    %561 = vmatprep.subr.mxu0 0.0
    %562 = vmatpush1.xpose.msra.mxu0 0.0
    %563 = vmatprep.subr.mxu0 0.0
    %564 = vmatpush1.xpose.msra.mxu0 0.0
    %565 = vmatprep.subr.mxu0 0.0
    %566 = vmatpush1.xpose.msra.mxu0 0.0
    %567 = vmatprep.subr.mxu0 0.0
    %568 = vmatpush1.xpose.msra.mxu0 0.0
    %569 = vmatprep.subr.mxu0 0.0
    %570 = vmatpush1.xpose.msra.mxu0 0.0
    %571 = vmatprep.subr.mxu0 0.0
    %572 = vmatpush1.xpose.msra.mxu0 0.0
    %573 = vmatprep.subr.mxu0 0.0
    %574 = vmatpush1.xpose.msra.mxu0 0.0
    %575 = vmatprep.subr.mxu0 0.0
    %576 = vmatpush1.xpose.msra.mxu0 0.0
    %577 = vmatprep.subr.mxu0 0.0
    %578 = vmatpush1.xpose.msra.mxu0 0.0
    %579 = vmatprep.subr.mxu0 0.0
    %580 = vmatpush1.xpose.msra.mxu0 0.0
    %581 = vmatprep.subr.mxu0 0.0
    %582 = vmatpush1.xpose.msra.mxu0 0.0
    %583 = vmatprep.subr.mxu0 0.0
    %584 = vmatpush1.xpose.msra.mxu0 %v553
    %585 = vmatprep.subr.mxu0 0.0
    %586 = vmatpush1.xpose.msra.mxu0 %v551
    %587 = vmatprep.subr.mxu0 0.0
    %588 = vmatpush2.xpose.msra.mxu0 0.0
    %589 = vmatprep.subr.mxu0 0.0
    %590 = vmatpush2.xpose.msra.mxu0 0.0
    %591 = vmatprep.subr.mxu0 0.0
    %592 = vmatpush2.xpose.msra.mxu0 0.0
    %593 = vmatprep.subr.mxu0 0.0
    %594 = vmatpush2.xpose.msra.mxu0 0.0
    %595 = vmatprep.subr.mxu0 0.0
    %596 = vmatpush2.xpose.msra.mxu0 0.0
    %597 = vmatprep.subr.mxu0 0.0
    %598 = vmatpush2.xpose.msra.mxu0 0.0
    %599 = vmatprep.subr.mxu0 0.0
    %600 = vmatpush2.xpose.msra.mxu0 0.0
    %601 = vmatprep.subr.mxu0 0.0
    %602 = vmatpush2.xpose.msra.mxu0 0.0
    %603 = vmatprep.subr.mxu0 0.0
    %604 = vmatpush2.xpose.msra.mxu0 0.0
    %605 = vmatprep.subr.mxu0 0.0
    %606 = vmatpush2.xpose.msra.mxu0 0.0
    %607 = vmatprep.subr.mxu0 0.0
    %608 = vmatpush2.xpose.msra.mxu0 0.0
    %609 = vmatprep.subr.mxu0 0.0
    %610 = vmatpush2.xpose.msra.mxu0 0.0
    %611 = vmatprep.subr.mxu0 0.0
    %612 = vmatpush2.xpose.msra.mxu0 0.0
    %613 = vmatprep.subr.mxu0 0.0
    %614 = vmatpush2.xpose.msra.mxu0 0.0
    %615 = vmatprep.subr.mxu0 0.0
    %616 = vmatpush2.xpose.msra.mxu0 0.0
    %617 = vmatprep.subr.mxu0 0.0
    %618 = vmatpush2.xpose.msra.mxu0 0.0
    %619 = vmatprep.mubr.f32.mxu0 0.0
    %620 = vmatmul.mubr.f32.gmra.mxu0 %v547
    %v621 = vpop.f32.mrf.mxu0
    %v622 = vadd.f32 %v32, %v621
    %v623 = vpop.f32.mrf.mxu0
    %624 = vmatprep.mubr.f32.mxu0 0.0
    %625 = vmatmul.mubr.f32.gmra.mxu0 %v549
    %v626 = vpop.f32.mrf.mxu0
    %v627 = vadd.f32 %v33, %v626
    %v628 = vpop.f32.mrf.mxu0
    %629 = vdwg.mxu0
    %v630 = vsel %vm216, %v622, -inf
    %631 = vmax.xlane.f32.xlu0 %v630
    %v632 = vpop.xlane.xlu0 %631
    %v633 = vsel %vm216, %v627, -inf
    %634 = vmax.xlane.f32.xlu0 %v633
    %v635 = vpop.xlane.xlu0 %634
    %v636 = vsub.f32 %v622, %v632
    %v637 = vsub.f32 %v627, %v635
    %v638 = vmul.f32 %v636, 1.442695
    %v639 = vpow.pop %v638
    %v640 = vmul.f32 %v637, 1.442695
    %v641 = vpow.pop %v640
    %v642 = vsel %vm216, %v639, 0.0
    %643 = vadd.xlane.f32.xlu0 %v642
    %v644 = vpop.xlane.xlu0 %643
    %v645 = vsel %vm216, %v641, 0.0
    %646 = vadd.xlane.f32.xlu0 %v645
    %v647 = vpop.xlane.xlu0 %646
    %v648 = vrcp.pop %v644
    %v649 = vrcp.pop %v647
    %v650 = vmul.f32 %v639, %v648
    %v651 = vmul.f32 %v641, %v649
    %s652 = scalar_lea.vmem [#allocation4], 16
    %653 = vst.msk [vmem:[%s652] sm:$0xff] %vm132, %v650
    %655 = vrot.lane.b32.xlu0 %v651, 120
    %v656 = vpop.permute.xlu0 %655
    %s658 = scalar_lea.vmem [#allocation4], 48
    %659 = vst.msk [vmem:[%s658] sm:$0xff] %vm132, %v656
    %660 = vrot.lane.b32.xlu0 %v118, 48
    %v661 = vpop.permute.xlu0 %660
    %662 = vrot.lane.b32.xlu0 %v123, 48
    %v663 = vpop.permute.xlu0 %662
    %v667 = vsel %vm216, %v650, 0
    %v669 = vsel %vm216, %v651, 0
    %671 = vmatprep.subr.mxu0 0.0
    %672 = vmatpush1.msra.mxu0 0.0
    %673 = vmatprep.subr.mxu0 0.0
    %674 = vmatpush1.msra.mxu0 0.0
    %675 = vmatprep.subr.mxu0 0.0
    %676 = vmatpush1.msra.mxu0 0.0
    %677 = vmatprep.subr.mxu0 0.0
    %678 = vmatpush1.msra.mxu0 0.0
    %679 = vmatprep.subr.mxu0 0.0
    %680 = vmatpush1.msra.mxu0 0.0
    %681 = vmatprep.subr.mxu0 0.0
    %682 = vmatpush1.msra.mxu0 0.0
    %683 = vmatprep.subr.mxu0 0.0
    %684 = vmatpush1.msra.mxu0 0.0
    %685 = vmatprep.subr.mxu0 0.0
    %686 = vmatpush1.msra.mxu0 0.0
    %687 = vmatprep.subr.mxu0 0.0
    %688 = vmatpush1.msra.mxu0 0.0
    %689 = vmatprep.subr.mxu0 0.0
    %690 = vmatpush1.msra.mxu0 0.0
    %691 = vmatprep.subr.mxu0 0.0
    %692 = vmatpush1.msra.mxu0 0.0
    %693 = vmatprep.subr.mxu0 0.0
    %694 = vmatpush1.msra.mxu0 0.0
    %695 = vmatprep.subr.mxu0 0.0
    %696 = vmatpush1.msra.mxu0 0.0
    %697 = vmatprep.subr.mxu0 0.0
    %698 = vmatpush1.msra.mxu0 0.0
    %699 = vmatprep.subr.mxu0 0.0
    %700 = vmatpush1.msra.mxu0 %v663
    %701 = vmatprep.subr.mxu0 0.0
    %702 = vmatpush1.msra.mxu0 %v661
    %703 = vmatprep.subr.mxu0 0.0
    %704 = vmatpush2.msra.mxu0 0.0
    %705 = vmatprep.subr.mxu0 0.0
    %706 = vmatpush2.msra.mxu0 0.0
    %707 = vmatprep.subr.mxu0 0.0
    %708 = vmatpush2.msra.mxu0 0.0
    %709 = vmatprep.subr.mxu0 0.0
    %710 = vmatpush2.msra.mxu0 0.0
    %711 = vmatprep.subr.mxu0 0.0
    %712 = vmatpush2.msra.mxu0 0.0
    %713 = vmatprep.subr.mxu0 0.0
    %714 = vmatpush2.msra.mxu0 0.0
    %715 = vmatprep.subr.mxu0 0.0
    %716 = vmatpush2.msra.mxu0 0.0
    %717 = vmatprep.subr.mxu0 0.0
    %718 = vmatpush2.msra.mxu0 0.0
    %719 = vmatprep.subr.mxu0 0.0
    %720 = vmatpush2.msra.mxu0 0.0
    %721 = vmatprep.subr.mxu0 0.0
    %722 = vmatpush2.msra.mxu0 0.0
    %723 = vmatprep.subr.mxu0 0.0
    %724 = vmatpush2.msra.mxu0 0.0
    %725 = vmatprep.subr.mxu0 0.0
    %726 = vmatpush2.msra.mxu0 0.0
    %727 = vmatprep.subr.mxu0 0.0
    %728 = vmatpush2.msra.mxu0 0.0
    %729 = vmatprep.subr.mxu0 0.0
    %730 = vmatpush2.msra.mxu0 0.0
    %731 = vmatprep.subr.mxu0 0.0
    %732 = vmatpush2.msra.mxu0 0.0
    %733 = vmatprep.subr.mxu0 0.0
    %734 = vmatpush2.msra.mxu0 0.0
    %735 = vmatprep.mubr.f32.mxu0 0.0
    %736 = vmatmul.mubr.f32.gmra.mxu0 %v667
    %v737 = vpop.f32.mrf.mxu0
    %v738 = vadd.f32 0.0, %v737
    %v739 = vpop.f32.mrf.mxu0
    %740 = vmatprep.mubr.f32.mxu0 0.0
    %741 = vmatmul.mubr.f32.gmra.mxu0 %v669
    %v742 = vpop.f32.mrf.mxu0
    %v743 = vadd.f32 0.0, %v742
    %v744 = vpop.f32.mrf.mxu0
    %745 = vdwg.mxu0
    %746 = vrot.lane.b32.xlu0 %v118, 104
    %v747 = vpop.permute.xlu0 %746
    %748 = vrot.lane.b32.xlu0 %v123, 104
    %v749 = vpop.permute.xlu0 %748
    %750 = vrot.lane.b32.xlu0 %v118, 72
    %v751 = vpop.permute.xlu0 %750
    %752 = vrot.lane.b32.xlu0 %v123, 72
    %v753 = vpop.permute.xlu0 %752
    %v754 = vsel %vm132, %v747, 0
    %v756 = vsel %vm132, %v749, 0
    %v758 = vsel %vm132, %v751, 0
    %v760 = vsel %vm132, %v753, 0
    %762 = vmatprep.subr.mxu0 0.0
    %763 = vmatpush1.xpose.msra.mxu0 0.0
    %764 = vmatprep.subr.mxu0 0.0
    %765 = vmatpush1.xpose.msra.mxu0 0.0
    %766 = vmatprep.subr.mxu0 0.0
    %767 = vmatpush1.xpose.msra.mxu0 0.0
    %768 = vmatprep.subr.mxu0 0.0
    %769 = vmatpush1.xpose.msra.mxu0 0.0
    %770 = vmatprep.subr.mxu0 0.0
    %771 = vmatpush1.xpose.msra.mxu0 0.0
    %772 = vmatprep.subr.mxu0 0.0
    %773 = vmatpush1.xpose.msra.mxu0 0.0
    %774 = vmatprep.subr.mxu0 0.0
    %775 = vmatpush1.xpose.msra.mxu0 0.0
    %776 = vmatprep.subr.mxu0 0.0
    %777 = vmatpush1.xpose.msra.mxu0 0.0
    %778 = vmatprep.subr.mxu0 0.0
    %779 = vmatpush1.xpose.msra.mxu0 0.0
    %780 = vmatprep.subr.mxu0 0.0
    %781 = vmatpush1.xpose.msra.mxu0 0.0
    %782 = vmatprep.subr.mxu0 0.0
    %783 = vmatpush1.xpose.msra.mxu0 0.0
    %784 = vmatprep.subr.mxu0 0.0
    %785 = vmatpush1.xpose.msra.mxu0 0.0
    %786 = vmatprep.subr.mxu0 0.0
    %787 = vmatpush1.xpose.msra.mxu0 0.0
    %788 = vmatprep.subr.mxu0 0.0
    %789 = vmatpush1.xpose.msra.mxu0 0.0
    %790 = vmatprep.subr.mxu0 0.0
    %791 = vmatpush1.xpose.msra.mxu0 %v760
    %792 = vmatprep.subr.mxu0 0.0
    %793 = vmatpush1.xpose.msra.mxu0 %v758
    %794 = vmatprep.subr.mxu0 0.0
    %795 = vmatpush2.xpose.msra.mxu0 0.0
    %796 = vmatprep.subr.mxu0 0.0
    %797 = vmatpush2.xpose.msra.mxu0 0.0
    %798 = vmatprep.subr.mxu0 0.0
    %799 = vmatpush2.xpose.msra.mxu0 0.0
    %800 = vmatprep.subr.mxu0 0.0
    %801 = vmatpush2.xpose.msra.mxu0 0.0
    %802 = vmatprep.subr.mxu0 0.0
    %803 = vmatpush2.xpose.msra.mxu0 0.0
    %804 = vmatprep.subr.mxu0 0.0
    %805 = vmatpush2.xpose.msra.mxu0 0.0
    %806 = vmatprep.subr.mxu0 0.0
    %807 = vmatpush2.xpose.msra.mxu0 0.0
    %808 = vmatprep.subr.mxu0 0.0
    %809 = vmatpush2.xpose.msra.mxu0 0.0
    %810 = vmatprep.subr.mxu0 0.0
    %811 = vmatpush2.xpose.msra.mxu0 0.0
    %812 = vmatprep.subr.mxu0 0.0
    %813 = vmatpush2.xpose.msra.mxu0 0.0
    %814 = vmatprep.subr.mxu0 0.0
    %815 = vmatpush2.xpose.msra.mxu0 0.0
    %816 = vmatprep.subr.mxu0 0.0
    %817 = vmatpush2.xpose.msra.mxu0 0.0
    %818 = vmatprep.subr.mxu0 0.0
    %819 = vmatpush2.xpose.msra.mxu0 0.0
    %820 = vmatprep.subr.mxu0 0.0
    %821 = vmatpush2.xpose.msra.mxu0 0.0
    %822 = vmatprep.subr.mxu0 0.0
    %823 = vmatpush2.xpose.msra.mxu0 0.0
    %824 = vmatprep.subr.mxu0 0.0
    %825 = vmatpush2.xpose.msra.mxu0 0.0
    %826 = vmatprep.mubr.f32.mxu0 0.0
    %827 = vmatmul.mubr.f32.gmra.mxu0 %v754
    %v828 = vpop.f32.mrf.mxu0
    %v829 = vadd.f32 %v32, %v828
    %v830 = vpop.f32.mrf.mxu0
    %831 = vmatprep.mubr.f32.mxu0 0.0
    %832 = vmatmul.mubr.f32.gmra.mxu0 %v756
    %v833 = vpop.f32.mrf.mxu0
    %v834 = vadd.f32 %v33, %v833
    %v835 = vpop.f32.mrf.mxu0
    %836 = vdwg.mxu0
    %v837 = vsel %vm216, %v829, -inf
    %838 = vmax.xlane.f32.xlu0 %v837
    %v839 = vpop.xlane.xlu0 %838
    %v840 = vsel %vm216, %v834, -inf
    %841 = vmax.xlane.f32.xlu0 %v840
    %v842 = vpop.xlane.xlu0 %841
    %v843 = vsub.f32 %v829, %v839
    %v844 = vsub.f32 %v834, %v842
    %v845 = vmul.f32 %v843, 1.442695
    %v846 = vpow.pop %v845
    %v847 = vmul.f32 %v844, 1.442695
    %v848 = vpow.pop %v847
    %v849 = vsel %vm216, %v846, 0.0
    %850 = vadd.xlane.f32.xlu0 %v849
    %v851 = vpop.xlane.xlu0 %850
    %v852 = vsel %vm216, %v848, 0.0
    %853 = vadd.xlane.f32.xlu0 %v852
    %v854 = vpop.xlane.xlu0 %853
    %v855 = vrcp.pop %v851
    %v856 = vrcp.pop %v854
    %v857 = vmul.f32 %v846, %v855
    %v858 = vmul.f32 %v848, %v856
    %s859 = scalar_lea.vmem [#allocation4], 24
    %860 = vst.msk [vmem:[%s859] sm:$0xff] %vm132, %v857
    %862 = vrot.lane.b32.xlu0 %v858, 120
    %v863 = vpop.permute.xlu0 %862
    %s865 = scalar_lea.vmem [#allocation4], 56
    %866 = vst.msk [vmem:[%s865] sm:$0xff] %vm132, %v863
    %867 = vrot.lane.b32.xlu0 %v118, 40
    %v868 = vpop.permute.xlu0 %867
    %869 = vrot.lane.b32.xlu0 %v123, 40
    %v870 = vpop.permute.xlu0 %869
    %v874 = vsel %vm216, %v857, 0
    %v876 = vsel %vm216, %v858, 0
    %878 = vmatprep.subr.mxu0 0.0
    %879 = vmatpush1.msra.mxu0 0.0
    %880 = vmatprep.subr.mxu0 0.0
    %881 = vmatpush1.msra.mxu0 0.0
    %882 = vmatprep.subr.mxu0 0.0
    %883 = vmatpush1.msra.mxu0 0.0
    %884 = vmatprep.subr.mxu0 0.0
    %885 = vmatpush1.msra.mxu0 0.0
    %886 = vmatprep.subr.mxu0 0.0
    %887 = vmatpush1.msra.mxu0 0.0
    %888 = vmatprep.subr.mxu0 0.0
    %889 = vmatpush1.msra.mxu0 0.0
    %890 = vmatprep.subr.mxu0 0.0
    %891 = vmatpush1.msra.mxu0 0.0
    %892 = vmatprep.subr.mxu0 0.0
    %893 = vmatpush1.msra.mxu0 0.0
    %894 = vmatprep.subr.mxu0 0.0
    %895 = vmatpush1.msra.mxu0 0.0
    %896 = vmatprep.subr.mxu0 0.0
    %897 = vmatpush1.msra.mxu0 0.0
    %898 = vmatprep.subr.mxu0 0.0
    %899 = vmatpush1.msra.mxu0 0.0
    %900 = vmatprep.subr.mxu0 0.0
    %901 = vmatpush1.msra.mxu0 0.0
    %902 = vmatprep.subr.mxu0 0.0
    %903 = vmatpush1.msra.mxu0 0.0
    %904 = vmatprep.subr.mxu0 0.0
    %905 = vmatpush1.msra.mxu0 0.0
    %906 = vmatprep.subr.mxu0 0.0
    %907 = vmatpush1.msra.mxu0 %v870
    %908 = vmatprep.subr.mxu0 0.0
    %909 = vmatpush1.msra.mxu0 %v868
    %910 = vmatprep.subr.mxu0 0.0
    %911 = vmatpush2.msra.mxu0 0.0
    %912 = vmatprep.subr.mxu0 0.0
    %913 = vmatpush2.msra.mxu0 0.0
    %914 = vmatprep.subr.mxu0 0.0
    %915 = vmatpush2.msra.mxu0 0.0
    %916 = vmatprep.subr.mxu0 0.0
    %917 = vmatpush2.msra.mxu0 0.0
    %918 = vmatprep.subr.mxu0 0.0
    %919 = vmatpush2.msra.mxu0 0.0
    %920 = vmatprep.subr.mxu0 0.0
    %921 = vmatpush2.msra.mxu0 0.0
    %922 = vmatprep.subr.mxu0 0.0
    %923 = vmatpush2.msra.mxu0 0.0
    %924 = vmatprep.subr.mxu0 0.0
    %925 = vmatpush2.msra.mxu0 0.0
    %926 = vmatprep.subr.mxu0 0.0
    %927 = vmatpush2.msra.mxu0 0.0
    %928 = vmatprep.subr.mxu0 0.0
    %929 = vmatpush2.msra.mxu0 0.0
    %930 = vmatprep.subr.mxu0 0.0
    %931 = vmatpush2.msra.mxu0 0.0
    %932 = vmatprep.subr.mxu0 0.0
    %933 = vmatpush2.msra.mxu0 0.0
    %934 = vmatprep.subr.mxu0 0.0
    %935 = vmatpush2.msra.mxu0 0.0
    %936 = vmatprep.subr.mxu0 0.0
    %937 = vmatpush2.msra.mxu0 0.0
    %938 = vmatprep.subr.mxu0 0.0
    %939 = vmatpush2.msra.mxu0 0.0
    %940 = vmatprep.subr.mxu0 0.0
    %941 = vmatpush2.msra.mxu0 0.0
    %942 = vmatprep.mubr.f32.mxu0 0.0
    %943 = vmatmul.mubr.f32.gmra.mxu0 %v874
    %v944 = vpop.f32.mrf.mxu0
    %v945 = vadd.f32 0.0, %v944
    %v946 = vpop.f32.mrf.mxu0
    %947 = vmatprep.mubr.f32.mxu0 0.0
    %948 = vmatmul.mubr.f32.gmra.mxu0 %v876
    %v949 = vpop.f32.mrf.mxu0
    %v950 = vadd.f32 0.0, %v949
    %v951 = vpop.f32.mrf.mxu0
    %952 = vdwg.mxu0
    %955 = vrot.lane.b32.xlu0 %v531, 8
    %v956 = vpop.permute.xlu0 %955
    %957 = vrot.lane.b32.xlu0 %v536, 8
    %v958 = vpop.permute.xlu0 %957
    %963 = vrot.lane.b32.xlu0 %v738, 16
    %v964 = vpop.permute.xlu0 %963
    %965 = vrot.lane.b32.xlu0 %v743, 16
    %v966 = vpop.permute.xlu0 %965
    %971 = vrot.lane.b32.xlu0 %v945, 24
    %v972 = vpop.permute.xlu0 %971
    %973 = vrot.lane.b32.xlu0 %v950, 24
    %v974 = vpop.permute.xlu0 %973
    %v977 = vsel %vm132, %v324, %v956
    %v978 = vsel %vm132, %v329, %v958
    %v979 = vsel %vm216, %v977, %v964
    %v980 = vsel %vm216, %v978, %v966
    %vm981 = vcmask 195584
    %v982 = vsel %vm981, %v979, %v972
    %v983 = vsel %vm981, %v980, %v974
    %v984 = vld [vmem:[%s3] sm:$0xff]
    %v985 = vld [vmem:[%s3 + $0x8] sm:$0xff]
    %v986 = vld [vmem:[%s3 + $0x10] sm:$0xff]
    %v987 = vld [vmem:[%s3 + $0x18] sm:$0xff]
    %v988 = vlaneseq
    %v989 = vshrl.u32 %v988, 7
    %v990 = vsub.s32 2, %v989
    %v991 = vrot.slane %v34, %v990
    %v993 = vsel %vm44, %v982, 0
    %v996 = vsel %vm44, %v983, 0
    %998 = vmatprep.subr.mxu0 0.0
    %999 = vmatpush1.msra.mxu0 0.0
    %1000 = vmatprep.subr.mxu0 0.0
    %1001 = vmatpush1.msra.mxu0 0.0
    %1002 = vmatprep.subr.mxu0 0.0
    %1003 = vmatpush1.msra.mxu0 0.0
    %1004 = vmatprep.subr.mxu0 0.0
    %1005 = vmatpush1.msra.mxu0 0.0
    %1006 = vmatprep.subr.mxu0 0.0
    %1007 = vmatpush1.msra.mxu0 0.0
    %1008 = vmatprep.subr.mxu0 0.0
    %1009 = vmatpush1.msra.mxu0 0.0
    %1010 = vmatprep.subr.mxu0 0.0
    %1011 = vmatpush1.msra.mxu0 0.0
    %1012 = vmatprep.subr.mxu0 0.0
    %1013 = vmatpush1.msra.mxu0 0.0
    %1014 = vmatprep.subr.mxu0 0.0
    %1015 = vmatpush1.msra.mxu0 0.0
    %1016 = vmatprep.subr.mxu0 0.0
    %1017 = vmatpush1.msra.mxu0 0.0
    %1018 = vmatprep.subr.mxu0 0.0
    %1019 = vmatpush1.msra.mxu0 0.0
    %1020 = vmatprep.subr.mxu0 0.0
    %1021 = vmatpush1.msra.mxu0 0.0
    %1022 = vmatprep.subr.mxu0 0.0
    %1023 = vmatpush1.msra.mxu0 %v987
    %1024 = vmatprep.subr.mxu0 0.0
    %1025 = vmatpush1.msra.mxu0 %v986
    %1026 = vmatprep.subr.mxu0 0.0
    %1027 = vmatpush1.msra.mxu0 %v985
    %1028 = vmatprep.subr.mxu0 0.0
    %1029 = vmatpush1.msra.mxu0 %v984
    %1030 = vmatprep.subr.mxu0 0.0
    %1031 = vmatpush2.msra.mxu0 0.0
    %1032 = vmatprep.subr.mxu0 0.0
    %1033 = vmatpush2.msra.mxu0 0.0
    %1034 = vmatprep.subr.mxu0 0.0
    %1035 = vmatpush2.msra.mxu0 0.0
    %1036 = vmatprep.subr.mxu0 0.0
    %1037 = vmatpush2.msra.mxu0 0.0
    %1038 = vmatprep.subr.mxu0 0.0
    %1039 = vmatpush2.msra.mxu0 0.0
    %1040 = vmatprep.subr.mxu0 0.0
    %1041 = vmatpush2.msra.mxu0 0.0
    %1042 = vmatprep.subr.mxu0 0.0
    %1043 = vmatpush2.msra.mxu0 0.0
    %1044 = vmatprep.subr.mxu0 0.0
    %1045 = vmatpush2.msra.mxu0 0.0
    %1046 = vmatprep.subr.mxu0 0.0
    %1047 = vmatpush2.msra.mxu0 0.0
    %1048 = vmatprep.subr.mxu0 0.0
    %1049 = vmatpush2.msra.mxu0 0.0
    %1050 = vmatprep.subr.mxu0 0.0
    %1051 = vmatpush2.msra.mxu0 0.0
    %1052 = vmatprep.subr.mxu0 0.0
    %1053 = vmatpush2.msra.mxu0 0.0
    %1054 = vmatprep.subr.mxu0 0.0
    %1055 = vmatpush2.msra.mxu0 0.0
    %1056 = vmatprep.subr.mxu0 0.0
    %1057 = vmatpush2.msra.mxu0 0.0
    %1058 = vmatprep.subr.mxu0 0.0
    %1059 = vmatpush2.msra.mxu0 0.0
    %1060 = vmatprep.subr.mxu0 0.0
    %1061 = vmatpush2.msra.mxu0 0.0
    %1062 = vmatprep.mubr.f32.mxu0 0.0
    %1063 = vmatmul.mubr.f32.gmra.mxu0 %v993
    %v1064 = vpop.f32.mrf.mxu0
    %v1065 = vadd.f32 %v991, %v1064
    %v1066 = vpop.f32.mrf.mxu0
    %1067 = vmatprep.mubr.f32.mxu0 0.0
    %1068 = vmatmul.mubr.f32.gmra.mxu0 %v996
    %v1069 = vpop.f32.mrf.mxu0
    %v1070 = vadd.f32 %v991, %v1069
    %v1071 = vpop.f32.mrf.mxu0
    %1072 = vdwg.mxu0
    %v1073 = vadd.f32 %v1065, %v30
    %v1074 = vadd.f32 %v1070, %v31
    %v1075 = vsel %vm44, %v1073, 0.0
    %1076 = vadd.xlane.f32.xlu0 %v1075
    %v1077 = vpop.xlane.xlu0 %1076
    %v1078 = vsel %vm44, %v1074, 0.0
    %1079 = vadd.xlane.f32.xlu0 %v1078
    %v1080 = vpop.xlane.xlu0 %1079
    %v1081 = vrcp.pop 32.0
    %v1082 = vmul.f32 %v1077, %v1081
    %v1083 = vmul.f32 %v1080, %v1081
    %v1084 = vsub.f32 %v1073, %v1082
    %v1085 = vsub.f32 %v1074, %v1083
    %v1086 = vmul.f32 %v1084, %v1084
    %v1087 = vmul.f32 %v1085, %v1085
    %v1088 = vsel %vm44, %v1086, 0.0
    %1089 = vadd.xlane.f32.xlu0 %v1088
    %v1090 = vpop.xlane.xlu0 %1089
    %v1091 = vsel %vm44, %v1087, 0.0
    %1092 = vadd.xlane.f32.xlu0 %v1091
    %v1093 = vpop.xlane.xlu0 %1092
    %v1094 = vmul.f32 %v1090, %v1081
    %v1095 = vmul.f32 %v1093, %v1081
    %v1096 = vadd.f32 %v1094, 1e-06
    %v1097 = vadd.f32 %v1095, 1e-06
    %v1098 = vrsqrt.pop %v1096
    %v1099 = vrsqrt.pop %v1097
    %v1100 = vmul.f32 %v1084, %v1098
    %v1101 = vmul.f32 %v1085, %v1099
    %v1102 = vlaneseq
    %v1103 = vshrl.u32 %v1102, 7
    %v1104 = vsub.s32 4, %v1103
    %v1105 = vrot.slane %v34, %v1104
    %v1106 = vmul.f32 %v1100, %v1105
    %v1107 = vmul.f32 %v1101, %v1105
    %v1108 = vlaneseq
    %v1109 = vshrl.u32 %v1108, 7
    %v1110 = vsub.s32 5, %v1109
    %v1111 = vrot.slane %v34, %v1110
    %v1112 = vadd.f32 %v1106, %v1111
    %v1113 = vadd.f32 %v1107, %v1111
    %v1114 = vadd.f32 %v1112, %v30
    %v1115 = vadd.f32 %v1113, %v31
    %v1116 = vsel %vm44, %v1114, 0.0
    %1117 = vadd.xlane.f32.xlu0 %v1116
    %v1118 = vpop.xlane.xlu0 %1117
    %v1119 = vsel %vm44, %v1115, 0.0
    %1120 = vadd.xlane.f32.xlu0 %v1119
    %v1121 = vpop.xlane.xlu0 %1120
    %v1122 = vmul.f32 %v1118, %v1081
    %v1123 = vmul.f32 %v1121, %v1081
    %v1124 = vsub.f32 %v1114, %v1122
    %v1125 = vsub.f32 %v1115, %v1123
    %v1126 = vmul.f32 %v1124, %v1124
    %v1127 = vmul.f32 %v1125, %v1125
    %v1128 = vsel %vm44, %v1126, 0.0
    %1129 = vadd.xlane.f32.xlu0 %v1128
    %v1130 = vpop.xlane.xlu0 %1129
    %v1131 = vsel %vm44, %v1127, 0.0
    %1132 = vadd.xlane.f32.xlu0 %v1131
    %v1133 = vpop.xlane.xlu0 %1132
    %v1134 = vmul.f32 %v1130, %v1081
    %v1135 = vmul.f32 %v1133, %v1081
    %v1136 = vadd.f32 %v1134, 1e-06
    %v1137 = vadd.f32 %v1135, 1e-06
    %v1138 = vrsqrt.pop %v1136
    %v1139 = vrsqrt.pop %v1137
    %v1140 = vmul.f32 %v1124, %v1138
    %v1141 = vmul.f32 %v1125, %v1139
    %v1142 = vlaneseq
    %v1143 = vshrl.u32 %v1142, 7
    %v1144 = vsub.s32 6, %v1143
    %v1145 = vrot.slane %v34, %v1144
    %v1146 = vmul.f32 %v1140, %v1145
    %v1147 = vmul.f32 %v1141, %v1145
    %v1148 = vlaneseq
    %v1149 = vshrl.u32 %v1148, 7
    %v1150 = vsub.s32 7, %v1149
    %v1151 = vrot.slane %v34, %v1150
    %v1152 = vadd.f32 %v1146, %v1151
    %v1153 = vadd.f32 %v1147, %v1151
    %v1154 = vld [vmem:[%s4] sm:$0xff]
    %v1155 = vld [vmem:[%s4 + $0x8] sm:$0xff]
    %v1156 = vld [vmem:[%s4 + $0x10] sm:$0xff]
    %v1157 = vld [vmem:[%s4 + $0x18] sm:$0xff]
    %v1158 = vlaneseq
    %v1159 = vshrl.u32 %v1158, 7
    %v1160 = vsub.s32 1, %v1159
    %v1161 = vrot.slane %v34, %v1160
    %v1163 = vsel %vm44, %v1152, 0
    %v1166 = vsel %vm44, %v1153, 0
    %1168 = vmatprep.subr.mxu0 0.0
    %1169 = vmatpush1.msra.mxu0 0.0
    %1170 = vmatprep.subr.mxu0 0.0
    %1171 = vmatpush1.msra.mxu0 0.0
    %1172 = vmatprep.subr.mxu0 0.0
    %1173 = vmatpush1.msra.mxu0 0.0
    %1174 = vmatprep.subr.mxu0 0.0
    %1175 = vmatpush1.msra.mxu0 0.0
    %1176 = vmatprep.subr.mxu0 0.0
    %1177 = vmatpush1.msra.mxu0 0.0
    %1178 = vmatprep.subr.mxu0 0.0
    %1179 = vmatpush1.msra.mxu0 0.0
    %1180 = vmatprep.subr.mxu0 0.0
    %1181 = vmatpush1.msra.mxu0 0.0
    %1182 = vmatprep.subr.mxu0 0.0
    %1183 = vmatpush1.msra.mxu0 0.0
    %1184 = vmatprep.subr.mxu0 0.0
    %1185 = vmatpush1.msra.mxu0 0.0
    %1186 = vmatprep.subr.mxu0 0.0
    %1187 = vmatpush1.msra.mxu0 0.0
    %1188 = vmatprep.subr.mxu0 0.0
    %1189 = vmatpush1.msra.mxu0 0.0
    %1190 = vmatprep.subr.mxu0 0.0
    %1191 = vmatpush1.msra.mxu0 0.0
    %1192 = vmatprep.subr.mxu0 0.0
    %1193 = vmatpush1.msra.mxu0 %v1157
    %1194 = vmatprep.subr.mxu0 0.0
    %1195 = vmatpush1.msra.mxu0 %v1156
    %1196 = vmatprep.subr.mxu0 0.0
    %1197 = vmatpush1.msra.mxu0 %v1155
    %1198 = vmatprep.subr.mxu0 0.0
    %1199 = vmatpush1.msra.mxu0 %v1154
    %1200 = vmatprep.subr.mxu0 0.0
    %1201 = vmatpush2.msra.mxu0 0.0
    %1202 = vmatprep.subr.mxu0 0.0
    %1203 = vmatpush2.msra.mxu0 0.0
    %1204 = vmatprep.subr.mxu0 0.0
    %1205 = vmatpush2.msra.mxu0 0.0
    %1206 = vmatprep.subr.mxu0 0.0
    %1207 = vmatpush2.msra.mxu0 0.0
    %1208 = vmatprep.subr.mxu0 0.0
    %1209 = vmatpush2.msra.mxu0 0.0
    %1210 = vmatprep.subr.mxu0 0.0
    %1211 = vmatpush2.msra.mxu0 0.0
    %1212 = vmatprep.subr.mxu0 0.0
    %1213 = vmatpush2.msra.mxu0 0.0
    %1214 = vmatprep.subr.mxu0 0.0
    %1215 = vmatpush2.msra.mxu0 0.0
    %1216 = vmatprep.subr.mxu0 0.0
    %1217 = vmatpush2.msra.mxu0 0.0
    %1218 = vmatprep.subr.mxu0 0.0
    %1219 = vmatpush2.msra.mxu0 0.0
    %1220 = vmatprep.subr.mxu0 0.0
    %1221 = vmatpush2.msra.mxu0 0.0
    %1222 = vmatprep.subr.mxu0 0.0
    %1223 = vmatpush2.msra.mxu0 0.0
    %1224 = vmatprep.subr.mxu0 0.0
    %1225 = vmatpush2.msra.mxu0 0.0
    %1226 = vmatprep.subr.mxu0 0.0
    %1227 = vmatpush2.msra.mxu0 0.0
    %1228 = vmatprep.subr.mxu0 0.0
    %1229 = vmatpush2.msra.mxu0 0.0
    %1230 = vmatprep.subr.mxu0 0.0
    %1231 = vmatpush2.msra.mxu0 0.0
    %1232 = vmatprep.mubr.f32.mxu0 0.0
    %1233 = vmatmul.mubr.f32.gmra.mxu0 %v1163
    %v1234 = vpop.f32.mrf.mxu0
    %v1235 = vadd.f32 %v1161, %v1234
    %v1236 = vpop.f32.mrf.mxu0
    %1237 = vmatprep.mubr.f32.mxu0 0.0
    %1238 = vmatmul.mubr.f32.gmra.mxu0 %v1166
    %v1239 = vpop.f32.mrf.mxu0
    %v1240 = vadd.f32 %v1161, %v1239
    %v1241 = vpop.f32.mrf.mxu0
    %1242 = vdwg.mxu0
    %v1243 = vmax.f32 %v1235, 0.0
    %v1244 = vmax.f32 %v1240, 0.0
    %v1245 = vld [vmem:[%s5] sm:$0xff]
    %v1246 = vld [vmem:[%s5 + $0x8] sm:$0xff]
    %v1247 = vld [vmem:[%s5 + $0x10] sm:$0xff]
    %v1248 = vld [vmem:[%s5 + $0x18] sm:$0xff]
    %v1249 = vld [vmem:[%s5 + $0x20] sm:$0xff]
    %v1250 = vld [vmem:[%s5 + $0x28] sm:$0xff]
    %v1251 = vld [vmem:[%s5 + $0x30] sm:$0xff]
    %v1252 = vld [vmem:[%s5 + $0x38] sm:$0xff]
    %v1253 = vlaneseq
    %v1254 = vshrl.u32 %v1253, 7
    %v1255 = vsub.s32 3, %v1254
    %v1256 = vrot.slane %v34, %v1255
    %vm1257 = vcmask 523264
    %v1259 = vsel %vm1257, %v1243, 0
    %v1262 = vsel %vm1257, %v1244, 0
    %1264 = vmatprep.subr.mxu0 0.0
    %1265 = vmatpush1.msra.mxu0 0.0
    %1266 = vmatprep.subr.mxu0 0.0
    %1267 = vmatpush1.msra.mxu0 0.0
    %1268 = vmatprep.subr.mxu0 0.0
    %1269 = vmatpush1.msra.mxu0 0.0
    %1270 = vmatprep.subr.mxu0 0.0
    %1271 = vmatpush1.msra.mxu0 0.0
    %1272 = vmatprep.subr.mxu0 0.0
    %1273 = vmatpush1.msra.mxu0 0.0
    %1274 = vmatprep.subr.mxu0 0.0
    %1275 = vmatpush1.msra.mxu0 0.0
    %1276 = vmatprep.subr.mxu0 0.0
    %1277 = vmatpush1.msra.mxu0 0.0
    %1278 = vmatprep.subr.mxu0 0.0
    %1279 = vmatpush1.msra.mxu0 0.0
    %1280 = vmatprep.subr.mxu0 0.0
    %1281 = vmatpush1.msra.mxu0 %v1252
    %1282 = vmatprep.subr.mxu0 0.0
    %1283 = vmatpush1.msra.mxu0 %v1251
    %1284 = vmatprep.subr.mxu0 0.0
    %1285 = vmatpush1.msra.mxu0 %v1250
    %1286 = vmatprep.subr.mxu0 0.0
    %1287 = vmatpush1.msra.mxu0 %v1249
    %1288 = vmatprep.subr.mxu0 0.0
    %1289 = vmatpush1.msra.mxu0 %v1248
    %1290 = vmatprep.subr.mxu0 0.0
    %1291 = vmatpush1.msra.mxu0 %v1247
    %1292 = vmatprep.subr.mxu0 0.0
    %1293 = vmatpush1.msra.mxu0 %v1246
    %1294 = vmatprep.subr.mxu0 0.0
    %1295 = vmatpush1.msra.mxu0 %v1245
    %1296 = vmatprep.subr.mxu0 0.0
    %1297 = vmatpush2.msra.mxu0 0.0
    %1298 = vmatprep.subr.mxu0 0.0
    %1299 = vmatpush2.msra.mxu0 0.0
    %1300 = vmatprep.subr.mxu0 0.0
    %1301 = vmatpush2.msra.mxu0 0.0
    %1302 = vmatprep.subr.mxu0 0.0
    %1303 = vmatpush2.msra.mxu0 0.0
    %1304 = vmatprep.subr.mxu0 0.0
    %1305 = vmatpush2.msra.mxu0 0.0
    %1306 = vmatprep.subr.mxu0 0.0
    %1307 = vmatpush2.msra.mxu0 0.0
    %1308 = vmatprep.subr.mxu0 0.0
    %1309 = vmatpush2.msra.mxu0 0.0
    %1310 = vmatprep.subr.mxu0 0.0
    %1311 = vmatpush2.msra.mxu0 0.0
    %1312 = vmatprep.subr.mxu0 0.0
    %1313 = vmatpush2.msra.mxu0 0.0
    %1314 = vmatprep.subr.mxu0 0.0
    %1315 = vmatpush2.msra.mxu0 0.0
    %1316 = vmatprep.subr.mxu0 0.0
    %1317 = vmatpush2.msra.mxu0 0.0
    %1318 = vmatprep.subr.mxu0 0.0
    %1319 = vmatpush2.msra.mxu0 0.0
    %1320 = vmatprep.subr.mxu0 0.0
    %1321 = vmatpush2.msra.mxu0 0.0
    %1322 = vmatprep.subr.mxu0 0.0
    %1323 = vmatpush2.msra.mxu0 0.0
    %1324 = vmatprep.subr.mxu0 0.0
    %1325 = vmatpush2.msra.mxu0 0.0
    %1326 = vmatprep.subr.mxu0 0.0
    %1327 = vmatpush2.msra.mxu0 0.0
    %1328 = vmatprep.mubr.f32.mxu0 0.0
    %1329 = vmatmul.mubr.f32.gmra.mxu0 %v1259
    %v1330 = vpop.f32.mrf.mxu0
    %v1331 = vadd.f32 %v1256, %v1330
    %v1332 = vpop.f32.mrf.mxu0
    %1333 = vmatprep.mubr.f32.mxu0 0.0
    %1334 = vmatmul.mubr.f32.gmra.mxu0 %v1262
    %v1335 = vpop.f32.mrf.mxu0
    %v1336 = vadd.f32 %v1256, %v1335
    %v1337 = vpop.f32.mrf.mxu0
    %1338 = vdwg.mxu0
    %v1339 = vadd.f32 %v1331, %v1152
    %v1340 = vadd.f32 %v1336, %v1153
    %v1341 = vsel %vm44, %v1339, 0.0
    %1342 = vadd.xlane.f32.xlu0 %v1341
    %v1343 = vpop.xlane.xlu0 %1342
    %v1344 = vsel %vm44, %v1340, 0.0
    %1345 = vadd.xlane.f32.xlu0 %v1344
    %v1346 = vpop.xlane.xlu0 %1345
    %v1347 = vmul.f32 %v1343, %v1081
    %v1348 = vmul.f32 %v1346, %v1081
    %v1349 = vsub.f32 %v1339, %v1347
    %v1350 = vsub.f32 %v1340, %v1348
    %v1351 = vmul.f32 %v1349, %v1349
    %v1352 = vmul.f32 %v1350, %v1350
    %v1353 = vsel %vm44, %v1351, 0.0
    %1354 = vadd.xlane.f32.xlu0 %v1353
    %v1355 = vpop.xlane.xlu0 %1354
    %v1356 = vsel %vm44, %v1352, 0.0
    %1357 = vadd.xlane.f32.xlu0 %v1356
    %v1358 = vpop.xlane.xlu0 %1357
    %v1359 = vmul.f32 %v1355, %v1081
    %v1360 = vmul.f32 %v1358, %v1081
    %v1361 = vadd.f32 %v1359, 1e-06
    %v1362 = vadd.f32 %v1360, 1e-06
    %v1363 = vrsqrt.pop %v1361
    %v1364 = vrsqrt.pop %v1362
    %v1365 = vmul.f32 %v1349, %v1363
    %v1366 = vmul.f32 %v1350, %v1364
    %v1367 = vlaneseq
    %v1368 = vshrl.u32 %v1367, 7
    %v1369 = vsub.s32 0, %v1368
    %v1370 = vrot.slane %v35, %v1369
    %v1371 = vmul.f32 %v1365, %v1370
    %v1372 = vmul.f32 %v1366, %v1370
    %v1373 = vlaneseq
    %v1374 = vshrl.u32 %v1373, 7
    %v1375 = vsub.s32 1, %v1374
    %v1376 = vrot.slane %v35, %v1375
    %v1377 = vadd.f32 %v1371, %v1376
    %v1378 = vadd.f32 %v1372, %v1376
    %v1379 = vadd.f32 %v1377, %v1152
    %v1380 = vadd.f32 %v1378, %v1153
    %v1381 = vsel %vm44, %v1379, 0.0
    %1382 = vadd.xlane.f32.xlu0 %v1381
    %v1383 = vpop.xlane.xlu0 %1382
    %v1384 = vsel %vm44, %v1380, 0.0
    %1385 = vadd.xlane.f32.xlu0 %v1384
    %v1386 = vpop.xlane.xlu0 %1385
    %v1387 = vmul.f32 %v1383, %v1081
    %v1388 = vmul.f32 %v1386, %v1081
    %v1389 = vsub.f32 %v1379, %v1387
    %v1390 = vsub.f32 %v1380, %v1388
    %v1391 = vmul.f32 %v1389, %v1389
    %v1392 = vmul.f32 %v1390, %v1390
    %v1393 = vsel %vm44, %v1391, 0.0
    %1394 = vadd.xlane.f32.xlu0 %v1393
    %v1395 = vpop.xlane.xlu0 %1394
    %v1396 = vsel %vm44, %v1392, 0.0
    %1397 = vadd.xlane.f32.xlu0 %v1396
    %v1398 = vpop.xlane.xlu0 %1397
    %v1399 = vmul.f32 %v1395, %v1081
    %v1400 = vmul.f32 %v1398, %v1081
    %v1401 = vadd.f32 %v1399, 1e-06
    %v1402 = vadd.f32 %v1400, 1e-06
    %v1403 = vrsqrt.pop %v1401
    %v1404 = vrsqrt.pop %v1402
    %v1405 = vmul.f32 %v1389, %v1403
    %v1406 = vmul.f32 %v1390, %v1404
    %v1407 = vmul.f32 %v1405, %v1145
    %v1408 = vmul.f32 %v1406, %v1145
    %v1409 = vadd.f32 %v1407, %v1151
    %v1410 = vadd.f32 %v1408, %v1151
    %1411 = vst.msk [vmem:[#allocation2] sm:$0xff] %vm44, %v1409
    %1412 = vst.msk [vmem:[#allocation2 + $0x8] sm:$0xff] %vm44, %v1410
    // Predicated region
    $region30: #{fwd.1} parent=1 // pred_check
      _
    $region31: #{fwd.1} parent=1 // pred_check_branch
      %1414 = sbr.rel (0) target = $region33
    $region32: #{fwd.1} parent=1 // pred_region
      %s1416 = ssub.s32 256, 256
      %1417 = vsyncadd [#allocation3], %s1416
      %s1418 = sshll.u32 [#allocation2], 4
      %s1419 = int_to_ptr.vmem [resolvable:$true] %s1418
      %1424 = dma.vmem_to_hbm [thread:$0]  %s1419, 256, %s7, [#allocation3], 128, 128, 8
    $region33: #{fwd.1} parent=1 // pred_fallthru
      _
    // Predicated region
    $region34: #{fwd.1} parent=1 // pred_check
      _
    $region35: #{fwd.1} parent=1 // pred_check_branch
      %1426 = sbr.rel (0) target = $region37
    $region36: #{fwd.1} parent=1 // pred_region
      %s1428 = ssub.s32 1024, 1024
      %1429 = vsyncadd [#allocation5], %s1428
      %s1430 = sshll.u32 [#allocation4], 4
      %s1431 = int_to_ptr.vmem [resolvable:$true] %s1430
      %1436 = dma.vmem_to_hbm [thread:$0]  %s1431, 1024, %s8, [#allocation5], 128, 128, 8
    $region37: #{fwd.1} parent=1 // pred_fallthru
      _
    // Predicated region
    $region38: #{fwd.1} parent=1 // pred_check
      _
    $region39: #{fwd.1} parent=1 // pred_check_branch
      %1438 = sbr.rel (0) target = $region41
    $region40: #{fwd.1} parent=1 // pred_region
      %1439 = dma.done [#allocation3], 256
    $region41: #{fwd.1} parent=1 // pred_fallthru
      _
    // Predicated region
    $region42: #{fwd.1} parent=1 // pred_check
      _
    $region43: #{fwd.1} parent=1 // pred_check_branch
      %1441 = sbr.rel (0) target = $region45
    $region44: #{fwd.1} parent=1 // pred_region
      %1442 = dma.done [#allocation5], 1024
    $region45: #{fwd.1} parent=1 // pred_fallthru
      _
    %1443 = vsyncpa [#allocation3], 1
    %1444 = vsyncpa [#allocation5], 1

</llo_original>
